<compile_context>
chip_gen: v7x
topology: tpu7x:2x2x1
jax: 0.10.0
libtpu: 0.0.40
codegen_flags: <defaults>
</compile_context>

<pallas_src>
import functools

import jax
import jax.numpy as jnp
import numpy as np
from jax.experimental import pallas as pl
from jax.experimental.pallas import tpu as pltpu


def _block_kernel(x_ref, wdw_ref, b1_ref, wpw_ref, b2_ref, o_ref,
                  xp_ref, xs0_ref, xs1_ref, xs2_ref, y_ref,
                  *, H, W, Ho, Wo, Cin, stride):
    """Fused dw-conv(3x3) + BN1 + ReLU + pw-conv(1x1) + BN2 + ReLU.

    x_ref  : (H, W, Cin)      bf16 input tile (one image)
    wdw_ref: (3, 3, Cin)      f32 depthwise weights (BN1 scale pre-folded)
    b1_ref : (1, Cin)         f32 BN1 folded bias
    wpw_ref: (Cin, TN)        bf16 pointwise weight tile (BN2 scale pre-folded)
    b2_ref : (1, TN)          f32 BN2 folded bias tile
    o_ref  : (Ho*Wo, TN)      f32 output tile (flattened spatial, lane = Cout tile)
    xp_ref : (H+2, W+2, Cin)  f32 scratch: zero-halo padded input
    xs*_ref: (H+2, Wo, Cin)   f32 scratch: W-shifted (dw=0/1/2), stride-subsampled copies
    y_ref  : (Ho*Wo, Cin)     bf16 scratch: dw+BN1+ReLU result (reused across Cout tiles)
    """
    j = pl.program_id(1)

    # ---- depthwise + BN1 + ReLU: compute ONCE per image, reuse per Cout tile ----
    # NOTE: relies on the Cout axis (j) being the innermost grid axis and staying
    # "arbitrary" in dimension_semantics; do not reorder the grid.
    @pl.when(j == 0)
    def _depthwise():
        # Interior store (single bf16 -> f32 cast of the input).
        xp_ref[pl.ds(1, H), pl.ds(1, W), :] = x_ref[...].astype(jnp.float32)
        # Zero only the 1-px halo ring, not the whole padded buffer.
        zrow = jnp.zeros((1, W + 2, Cin), jnp.float32)
        zcol = jnp.zeros((H + 2, 1, Cin), jnp.float32)
        xp_ref[pl.ds(0, 1), :, :] = zrow
        xp_ref[pl.ds(H + 1, 1), :, :] = zrow
        xp_ref[:, pl.ds(0, 1), :] = zcol
        xp_ref[:, pl.ds(W + 1, 1), :] = zcol

        # Build the three W-shifted (and stride-subsampled) copies ONCE so the
        # 9-tap loop below only slices along the un-tiled leading (row) axis.
        xs_refs = (xs0_ref, xs1_ref, xs2_ref)
        for dw in range(3):
            if stride == 1:
                xs_refs[dw][...] = xp_ref[:, pl.ds(dw, Wo), :]
            else:
                xs_refs[dw][...] = xp_ref[:, pl.ds(dw, Wo, stride), :]

        wdw = wdw_ref[...]  # (3, 3, Cin) f32, BN1 scale already folded in

        def tap(dh, dw):
            if stride == 1:
                return xs_refs[dw][pl.ds(dh, Ho), :, :]
            return xs_refs[dw][pl.ds(dh, Ho, stride), :, :]

        # 9 shifted multiply-adds on the VPU, f32 (portable: v5e has no bf16 VPU).
        acc = tap(0, 0) * wdw[0, 0, :]          # init with first tap (no zeros+add)
        for dh in range(3):
            for dw in range(3):
                if dh == 0 and dw == 0:
                    continue
                acc = acc + tap(dh, dw) * wdw[dh, dw, :]

        # BN1 bias + ReLU; single bf16 cast at the MXU boundary.  Stored already
        # flattened so the pointwise matmul needs no per-Cout-tile reshape
        # (free re-tiling since Wo % 8 == 0 here).
        # TODO(synk): pad y rows to 8-aligned Ho-blocks when Wo % 8 != 0
        # (MobileNet 14x14 / 7x7 stages) to avoid a relayout copy.
        y = jnp.maximum(acc + b1_ref[...], 0.0)
        y_ref[...] = y.reshape(Ho * Wo, Cin).astype(jnp.bfloat16)

    # ---- pointwise 1x1 conv on the MXU (bf16 inputs, f32 accumulate) ----
    z = jnp.dot(y_ref[...], wpw_ref[...], preferred_element_type=jnp.float32)
    # BN2 bias (scale folded into wpw) + ReLU
    o_ref[...] = jnp.maximum(z + b2_ref[...], 0.0).astype(o_ref.dtype)


def _tpu_vmem_capacity_bytes():
    try:
        return int(pltpu.get_tpu_info().vmem_capacity_bytes)
    except Exception:
        try:
            kind = jax.devices()[0].device_kind.lower()
        except Exception:
            kind = ""
        return (64 << 20) if "v7" in kind else (128 << 20)


def _is_v5e():
    try:
        kind = jax.devices()[0].device_kind.lower()
    except Exception:
        return False
    return ("v5 lite" in kind) or ("v5e" in kind) or ("v5lite" in kind)


def mobile_block_forward(x_nchw, params, stride=1):
    """x_nchw: (N, Cin, H, W) float32 -> (N, Cout, Ho, Wo) float32."""
    wdw, gamma1, beta1, mean1, var1, wpw, gamma2, beta2, mean2, var2 = params
    eps = 1e-5

    N, Cin, H, W = x_nchw.shape
    Cout = wpw.shape[1]
    Ho = (H + 2 - 3) // stride + 1
    Wo = (W + 2 - 3) // stride + 1
    Hp, Wp = H + 2, W + 2

    # ---- fold BN scale into the (tiny) weights; kernel only adds a bias ----
    inv1 = gamma1 / jnp.sqrt(var1 + eps)
    inv2 = gamma2 / jnp.sqrt(var2 + eps)
    wdw_f = (wdw * inv1).astype(jnp.float32)                     # (3, 3, Cin)
    b1 = (beta1 - mean1 * inv1).reshape(1, Cin).astype(jnp.float32)
    wpw_f = (wpw * inv2[None, :]).astype(jnp.bfloat16)           # (Cin, Cout), bf16 for MXU
    b2 = (beta2 - mean2 * inv2).reshape(1, Cout).astype(jnp.float32)

    # ---- Cout tiling: 256 fills the v6e/v7x MXU N-dim, 128 on v5e ----
    if Cout % 256 == 0 and not _is_v5e():
        TN = 256
    elif Cout % 128 == 0:
        TN = 128
    else:
        TN = Cout
    nj = Cout // TN

    # NCHW -> NHWC (channels on the TPU lane axis), shipped as bf16 to halve the
    # x HBM DMA.  No jnp.pad: the halo is built inside the kernel in VMEM.
    x = jnp.transpose(x_nchw, (0, 2, 3, 1)).astype(jnp.bfloat16)

    scratch_shapes = [
        pltpu.VMEM((Hp, Wp, Cin), jnp.float32),       # zero-halo padded input
        pltpu.VMEM((Hp, Wo, Cin), jnp.float32),       # W-shift dw=0 (stride-subsampled)
        pltpu.VMEM((Hp, Wo, Cin), jnp.float32),       # W-shift dw=1
        pltpu.VMEM((Hp, Wo, Cin), jnp.float32),       # W-shift dw=2
        pltpu.VMEM((Ho * Wo, Cin), jnp.bfloat16),     # dw+BN1+ReLU result
    ]

    kernel = functools.partial(_block_kernel, H=H, W=W, Ho=Ho, Wo=Wo, Cin=Cin,
                               stride=stride)

    # advisory cost estimate for XLA scheduling around the custom call
    flops = 2 * N * Ho * Wo * Cin * (9 + Cout)
    bytes_accessed = (N * H * W * Cin * 2 + N * Ho * Wo * Cout * 4
                      + (9 * Cin + Cin + Cout) * 4 + Cin * Cout * 2)
    cost = pl.CostEstimate(flops=flops, transcendentals=0,
                           bytes_accessed=bytes_accessed)

    # Explicit VMEM budget (lane/sublane-padded, double-buffered I/O), capped at
    # 75% of the *actual chip's* VMEM (v7x has only 64 MiB physical).
    def _ru(v, m):
        return -(-v // m) * m
    cl, tl = _ru(Cin, 128), _ru(TN, 128)
    est = (2 * (H * _ru(W, 16) * cl * 2)                              # x blocks (bf16, x2 buf)
           + 2 * (_ru(Ho * Wo, 8) * tl * 4)                           # out blocks (x2 buf)
           + 2 * (3 * 8 * cl * 4 + 8 * cl * 4                         # wdw, b1
                  + _ru(Cin, 16) * tl * 2 + 8 * tl * 4)               # wpw (bf16), b2
           + Hp * _ru(Wp, 8) * cl * 4                                 # xp scratch
           + 3 * Hp * _ru(Wo, 8) * cl * 4                             # xs0..2 scratch
           + _ru(Ho * Wo, 16) * cl * 2)                               # y scratch (bf16)
    vmem_cap = _tpu_vmem_capacity_bytes()
    vmem_limit = min(max(int(est * 1.25) + (2 << 20), 32 << 20),
                     int(0.75 * vmem_cap))

    out2d = pl.pallas_call(
        kernel,
        out_shape=jax.ShapeDtypeStruct((N, Ho * Wo, Cout), jnp.float32),
        grid=(N, nj),
        in_specs=[
            pl.BlockSpec((None, H, W, Cin), lambda n, j: (n, 0, 0, 0)),  # x (per image)
            pl.BlockSpec((3, 3, Cin), lambda n, j: (0, 0, 0)),           # dw weights
            pl.BlockSpec((1, Cin), lambda n, j: (0, 0)),                 # BN1 bias
            pl.BlockSpec((Cin, TN), lambda n, j: (0, j)),                # pw weights tile
            pl.BlockSpec((1, TN), lambda n, j: (0, j)),                  # BN2 bias tile
        ],
        out_specs=pl.BlockSpec((None, Ho * Wo, TN), lambda n, j: (n, 0, j)),
        scratch_shapes=scratch_shapes,
        compiler_params=pltpu.CompilerParams(
            # batch axis parallel (megacore); Cout axis MUST stay "arbitrary"
            # (and innermost) because the depthwise scratch is computed at
            # j == 0 and reused for j > 0.
            dimension_semantics=("parallel", "arbitrary"),
            vmem_limit_bytes=vmem_limit,
        ),
        cost_estimate=cost,
    )(x, wdw_f, b1, wpw_f, b2)

    # (N, Ho*Wo, Cout) -> (N, Ho, Wo, Cout) is a free view in NHWC layout;
    # then back to PyTorch NCHW.
    return jnp.transpose(out2d.reshape(N, Ho, Wo, Cout), (0, 3, 1, 2))


def reference_forward(x_nchw, params, stride=1):
    """Pure-JAX f32 reference (lax conv) for correctness checking."""
    wdw, gamma1, beta1, mean1, var1, wpw, gamma2, beta2, mean2, var2 = params
    eps = 1e-5
    N, Cin, H, W = x_nchw.shape
    Cout = wpw.shape[1]
    x = jnp.transpose(x_nchw, (0, 2, 3, 1))
    dw_k = wdw.reshape(3, 3, 1, Cin)
    y = jax.lax.conv_general_dilated(
        x, dw_k, window_strides=(stride, stride), padding=((1, 1), (1, 1)),
        dimension_numbers=("NHWC", "HWIO", "NHWC"), feature_group_count=Cin)
    y = (y - mean1) / jnp.sqrt(var1 + eps) * gamma1 + beta1
    y = jnp.maximum(y, 0.0)
    pw_k = wpw.reshape(1, 1, Cin, Cout)
    z = jax.lax.conv_general_dilated(
        y, pw_k, window_strides=(1, 1), padding="VALID",
        dimension_numbers=("NHWC", "HWIO", "NHWC"))
    z = (z - mean2) / jnp.sqrt(var2 + eps) * gamma2 + beta2
    z = jnp.maximum(z, 0.0)
    return jnp.transpose(z, (0, 3, 1, 2))


def make_params(key, in_planes, out_planes):
    ks = jax.random.split(key, 6)
    wdw = jax.random.normal(ks[0], (3, 3, in_planes), jnp.float32) * 0.2
    gamma1 = 1.0 + 0.1 * jax.random.normal(ks[1], (in_planes,), jnp.float32)
    beta1 = 0.05 * jax.random.normal(ks[2], (in_planes,), jnp.float32)
    mean1 = 0.1 * jnp.arange(in_planes, dtype=jnp.float32)
    var1 = 1.0 + 0.01 * jnp.arange(in_planes, dtype=jnp.float32)
    wpw = jax.random.normal(ks[3], (in_planes, out_planes), jnp.float32) * 0.2
    gamma2 = 1.0 + 0.1 * jax.random.normal(ks[4], (out_planes,), jnp.float32)
    beta2 = 0.05 * jax.random.normal(ks[5], (out_planes,), jnp.float32)
    mean2 = 0.05 * jnp.arange(out_planes, dtype=jnp.float32)
    var2 = 1.0 + 0.02 * jnp.arange(out_planes, dtype=jnp.float32)
    return (wdw, gamma1, beta1, mean1, var1, wpw, gamma2, beta2, mean2, var2)


if __name__ == "__main__":
    key = jax.random.PRNGKey(0)
    k1, k2, k3, k4 = jax.random.split(key, 4)

    # bf16 input + bf16 MXU matmul vs f32 reference -> loosened tolerance
    # (results differ from the f32 PyTorch reference at the ~1e-2 relative level).
    ATOL = RTOL = 5e-2

    # ---- stride = 1 block ----
    N, Cin, H, W, Cout = 2, 4, 16, 16, 8
    x = jax.random.normal(k1, (N, Cin, H, W), jnp.float32)
    params = make_params(k2, Cin, Cout)
    out = jax.block_until_ready(mobile_block_forward(x, params, stride=1))
    ref = jax.block_until_ready(reference_forward(x, params, stride=1))
    np.testing.assert_allclose(np.asarray(out), np.asarray(ref), atol=ATOL, rtol=RTOL)

    # ---- stride = 2 block (exercises the stride-subsampled W-shift path) ----
    N2, Cin2, H2, W2, Cout2 = 2, 8, 16, 16, 16
    x2 = jax.random.normal(k3, (N2, Cin2, H2, W2), jnp.float32)
    params2 = make_params(k4, Cin2, Cout2)
    out2 = jax.block_until_ready(mobile_block_forward(x2, params2, stride=2))
    ref2 = jax.block_until_ready(reference_forward(x2, params2, stride=2))
    np.testing.assert_allclose(np.asarray(out2), np.asarray(ref2), atol=ATOL, rtol=RTOL)

    print("KERNEL_OK")
</pallas_src>

<mosaic_0001>
module attributes {stable_mosaic.version = 11 : i64} {
  func.func @_block_kernel(%arg0: i32, %arg1: i32, %arg2: memref<1x16x16x4xbf16, #tpu.memory_space<vmem>>, %arg3: memref<3x3x4xf32, #tpu.memory_space<vmem>>, %arg4: memref<1x4xf32, #tpu.memory_space<vmem>>, %arg5: memref<4x8xbf16, #tpu.memory_space<vmem>>, %arg6: memref<1x8xf32, #tpu.memory_space<vmem>>, %arg7: memref<1x256x8xf32, #tpu.memory_space<vmem>>, %arg8: memref<18x18x4xf32, #tpu.memory_space<vmem>>, %arg9: memref<18x16x4xf32, #tpu.memory_space<vmem>>, %arg10: memref<18x16x4xf32, #tpu.memory_space<vmem>>, %arg11: memref<18x16x4xf32, #tpu.memory_space<vmem>>, %arg12: memref<256x4xbf16, #tpu.memory_space<vmem>>) attributes {dimension_semantics = [#tpu.dimension_semantics<parallel>, #tpu.dimension_semantics<arbitrary>], iteration_bounds = array<i64: 2, 1>, scalar_prefetch = 0 : i64, scratch_operands = 5 : i64, tpu.core_type = #tpu.core_type<tc>, window_params = [{transform_indices = @transform_0, window_bounds = array<i64: 1, 16, 16, 4>}, {pipeline_mode = #tpu.pipeline_mode<synchronous>, transform_indices = @transform_1, window_bounds = array<i64: 3, 3, 4>}, {pipeline_mode = #tpu.pipeline_mode<synchronous>, transform_indices = @transform_2, window_bounds = array<i64: 1, 4>}, {transform_indices = @transform_3, window_bounds = array<i64: 4, 8>}, {transform_indices = @transform_4, window_bounds = array<i64: 1, 8>}, {transform_indices = @transform_5, window_bounds = array<i64: 1, 256, 8>}]} {
    %c0_i32 = arith.constant 0 : i32
    %0 = arith.cmpi eq, %arg1, %c0_i32 : i32
    %1 = arith.extui %0 : i1 to i32
    %c0_i32_0 = arith.constant 0 : i32
    %2 = arith.cmpi ne, %1, %c0_i32_0 : i32
    scf.if %2 {
      %c0_10 = arith.constant 0 : index
      %c0_11 = arith.constant 0 : index
      %c0_12 = arith.constant 0 : index
      %c0_13 = arith.constant 0 : index
      %14 = vector.load %arg2[%c0_10, %c0_11, %c0_12, %c0_13] : memref<1x16x16x4xbf16, #tpu.memory_space<vmem>>, vector<1x16x16x4xbf16>
      %15 = vector.shape_cast %14 : vector<1x16x16x4xbf16> to vector<16x16x4xbf16>
      %16 = arith.extf %15 : vector<16x16x4xbf16> to vector<16x16x4xf32>
      %c1 = arith.constant 1 : index
      %c1_14 = arith.constant 1 : index
      %c0_15 = arith.constant 0 : index
      %17 = vector.load %arg8[%c1, %c1_14, %c0_15] : memref<18x18x4xf32, #tpu.memory_space<vmem>>, vector<16x16x4xf32>
      tpu.vector_store %arg8[%c1, %c1_14, %c0_15], %16 {strides = array<i32>} : memref<18x18x4xf32, #tpu.memory_space<vmem>>, vector<16x16x4xf32>,
      %cst_16 = arith.constant 0.000000e+00 : f32
      %18 = vector.broadcast %cst_16 : f32 to vector<1x18x4xf32>
      %cst_17 = arith.constant 0.000000e+00 : f32
      %19 = vector.broadcast %cst_17 : f32 to vector<18x1x4xf32>
      %c0_18 = arith.constant 0 : index
      %c0_19 = arith.constant 0 : index
      %c0_20 = arith.constant 0 : index
      %20 = vector.load %arg8[%c0_18, %c0_19, %c0_20] : memref<18x18x4xf32, #tpu.memory_space<vmem>>, vector<1x18x4xf32>
      tpu.vector_store %arg8[%c0_18, %c0_19, %c0_20], %18 {strides = array<i32>} : memref<18x18x4xf32, #tpu.memory_space<vmem>>, vector<1x18x4xf32>,
      %c17 = arith.constant 17 : index
      %c0_21 = arith.constant 0 : index
      %c0_22 = arith.constant 0 : index
      %21 = vector.load %arg8[%c17, %c0_21, %c0_22] : memref<18x18x4xf32, #tpu.memory_space<vmem>>, vector<1x18x4xf32>
      tpu.vector_store %arg8[%c17, %c0_21, %c0_22], %18 {strides = array<i32>} : memref<18x18x4xf32, #tpu.memory_space<vmem>>, vector<1x18x4xf32>,
      %c0_23 = arith.constant 0 : index
      %c0_24 = arith.constant 0 : index
      %c0_25 = arith.constant 0 : index
      %22 = vector.load %arg8[%c0_23, %c0_24, %c0_25] : memref<18x18x4xf32, #tpu.memory_space<vmem>>, vector<18x1x4xf32>
      tpu.vector_store %arg8[%c0_23, %c0_24, %c0_25], %19 {strides = array<i32>} : memref<18x18x4xf32, #tpu.memory_space<vmem>>, vector<18x1x4xf32>,
      %c0_26 = arith.constant 0 : index
      %c17_27 = arith.constant 17 : index
      %c0_28 = arith.constant 0 : index
      %23 = vector.load %arg8[%c0_26, %c17_27, %c0_28] : memref<18x18x4xf32, #tpu.memory_space<vmem>>, vector<18x1x4xf32>
      tpu.vector_store %arg8[%c0_26, %c17_27, %c0_28], %19 {strides = array<i32>} : memref<18x18x4xf32, #tpu.memory_space<vmem>>, vector<18x1x4xf32>,
      %c0_29 = arith.constant 0 : index
      %c0_30 = arith.constant 0 : index
      %c0_31 = arith.constant 0 : index
      %24 = vector.load %arg8[%c0_29, %c0_30, %c0_31] : memref<18x18x4xf32, #tpu.memory_space<vmem>>, vector<18x16x4xf32>
      %c0_32 = arith.constant 0 : index
      %c0_33 = arith.constant 0 : index
      %c0_34 = arith.constant 0 : index
      %25 = vector.load %arg9[%c0_32, %c0_33, %c0_34] : memref<18x16x4xf32, #tpu.memory_space<vmem>>, vector<18x16x4xf32>
      tpu.vector_store %arg9[%c0_32, %c0_33, %c0_34], %24 {strides = array<i32>} : memref<18x16x4xf32, #tpu.memory_space<vmem>>, vector<18x16x4xf32>,
      %c0_35 = arith.constant 0 : index
      %c1_36 = arith.constant 1 : index
      %c0_37 = arith.constant 0 : index
      %26 = vector.load %arg8[%c0_35, %c1_36, %c0_37] : memref<18x18x4xf32, #tpu.memory_space<vmem>>, vector<18x16x4xf32>
      %c0_38 = arith.constant 0 : index
      %c0_39 = arith.constant 0 : index
      %c0_40 = arith.constant 0 : index
      %27 = vector.load %arg10[%c0_38, %c0_39, %c0_40] : memref<18x16x4xf32, #tpu.memory_space<vmem>>, vector<18x16x4xf32>
      tpu.vector_store %arg10[%c0_38, %c0_39, %c0_40], %26 {strides = array<i32>} : memref<18x16x4xf32, #tpu.memory_space<vmem>>, vector<18x16x4xf32>,
      %c0_41 = arith.constant 0 : index
      %c2 = arith.constant 2 : index
      %c0_42 = arith.constant 0 : index
      %28 = vector.load %arg8[%c0_41, %c2, %c0_42] : memref<18x18x4xf32, #tpu.memory_space<vmem>>, vector<18x16x4xf32>
      %c0_43 = arith.constant 0 : index
      %c0_44 = arith.constant 0 : index
      %c0_45 = arith.constant 0 : index
      %29 = vector.load %arg11[%c0_43, %c0_44, %c0_45] : memref<18x16x4xf32, #tpu.memory_space<vmem>>, vector<18x16x4xf32>
      tpu.vector_store %arg11[%c0_43, %c0_44, %c0_45], %28 {strides = array<i32>} : memref<18x16x4xf32, #tpu.memory_space<vmem>>, vector<18x16x4xf32>,
      %c0_46 = arith.constant 0 : index
      %c0_47 = arith.constant 0 : index
      %c0_48 = arith.constant 0 : index
      %30 = vector.load %arg3[%c0_46, %c0_47, %c0_48] : memref<3x3x4xf32, #tpu.memory_space<vmem>>, vector<3x3x4xf32>
      %c0_49 = arith.constant 0 : index
      %c0_50 = arith.constant 0 : index
      %c0_51 = arith.constant 0 : index
      %31 = vector.load %arg9[%c0_49, %c0_50, %c0_51] : memref<18x16x4xf32, #tpu.memory_space<vmem>>, vector<16x16x4xf32>
      %32 = vector.extract_strided_slice %30 {offsets = [0, 0, 0], sizes = [1, 1, 4], strides = [1, 1, 1]} : vector<3x3x4xf32> to vector<1x1x4xf32>
      %33 = vector.shape_cast %32 : vector<1x1x4xf32> to vector<4xf32>
      %34 = vector.shape_cast %33 : vector<4xf32> to vector<1x1x4xf32>
      %35 = vector.broadcast %34 : vector<1x1x4xf32> to vector<16x16x4xf32>
      %36 = arith.mulf %31, %35 : vector<16x16x4xf32>
      %c0_52 = arith.constant 0 : index
      %c0_53 = arith.constant 0 : index
      %c0_54 = arith.constant 0 : index
      %37 = vector.load %arg10[%c0_52, %c0_53, %c0_54] : memref<18x16x4xf32, #tpu.memory_space<vmem>>, vector<16x16x4xf32>
      %38 = vector.extract_strided_slice %30 {offsets = [0, 1, 0], sizes = [1, 1, 4], strides = [1, 1, 1]} : vector<3x3x4xf32> to vector<1x1x4xf32>
      %39 = vector.shape_cast %38 : vector<1x1x4xf32> to vector<4xf32>
      %40 = vector.shape_cast %39 : vector<4xf32> to vector<1x1x4xf32>
      %41 = vector.broadcast %40 : vector<1x1x4xf32> to vector<16x16x4xf32>
      %42 = arith.mulf %37, %41 : vector<16x16x4xf32>
      %43 = arith.addf %36, %42 : vector<16x16x4xf32>
      %c0_55 = arith.constant 0 : index
      %c0_56 = arith.constant 0 : index
      %c0_57 = arith.constant 0 : index
      %44 = vector.load %arg11[%c0_55, %c0_56, %c0_57] : memref<18x16x4xf32, #tpu.memory_space<vmem>>, vector<16x16x4xf32>
      %45 = vector.extract_strided_slice %30 {offsets = [0, 2, 0], sizes = [1, 1, 4], strides = [1, 1, 1]} : vector<3x3x4xf32> to vector<1x1x4xf32>
      %46 = vector.shape_cast %45 : vector<1x1x4xf32> to vector<4xf32>
      %47 = vector.shape_cast %46 : vector<4xf32> to vector<1x1x4xf32>
      %48 = vector.broadcast %47 : vector<1x1x4xf32> to vector<16x16x4xf32>
      %49 = arith.mulf %44, %48 : vector<16x16x4xf32>
      %50 = arith.addf %43, %49 : vector<16x16x4xf32>
      %c1_58 = arith.constant 1 : index
      %c0_59 = arith.constant 0 : index
      %c0_60 = arith.constant 0 : index
      %51 = vector.load %arg9[%c1_58, %c0_59, %c0_60] : memref<18x16x4xf32, #tpu.memory_space<vmem>>, vector<16x16x4xf32>
      %52 = vector.extract_strided_slice %30 {offsets = [1, 0, 0], sizes = [1, 1, 4], strides = [1, 1, 1]} : vector<3x3x4xf32> to vector<1x1x4xf32>
      %53 = vector.shape_cast %52 : vector<1x1x4xf32> to vector<4xf32>
      %54 = vector.shape_cast %53 : vector<4xf32> to vector<1x1x4xf32>
      %55 = vector.broadcast %54 : vector<1x1x4xf32> to vector<16x16x4xf32>
      %56 = arith.mulf %51, %55 : vector<16x16x4xf32>
      %57 = arith.addf %50, %56 : vector<16x16x4xf32>
      %c1_61 = arith.constant 1 : index
      %c0_62 = arith.constant 0 : index
      %c0_63 = arith.constant 0 : index
      %58 = vector.load %arg10[%c1_61, %c0_62, %c0_63] : memref<18x16x4xf32, #tpu.memory_space<vmem>>, vector<16x16x4xf32>
      %59 = vector.extract_strided_slice %30 {offsets = [1, 1, 0], sizes = [1, 1, 4], strides = [1, 1, 1]} : vector<3x3x4xf32> to vector<1x1x4xf32>
      %60 = vector.shape_cast %59 : vector<1x1x4xf32> to vector<4xf32>
      %61 = vector.shape_cast %60 : vector<4xf32> to vector<1x1x4xf32>
      %62 = vector.broadcast %61 : vector<1x1x4xf32> to vector<16x16x4xf32>
      %63 = arith.mulf %58, %62 : vector<16x16x4xf32>
      %64 = arith.addf %57, %63 : vector<16x16x4xf32>
      %c1_64 = arith.constant 1 : index
      %c0_65 = arith.constant 0 : index
      %c0_66 = arith.constant 0 : index
      %65 = vector.load %arg11[%c1_64, %c0_65, %c0_66] : memref<18x16x4xf32, #tpu.memory_space<vmem>>, vector<16x16x4xf32>
      %66 = vector.extract_strided_slice %30 {offsets = [1, 2, 0], sizes = [1, 1, 4], strides = [1, 1, 1]} : vector<3x3x4xf32> to vector<1x1x4xf32>
      %67 = vector.shape_cast %66 : vector<1x1x4xf32> to vector<4xf32>
      %68 = vector.shape_cast %67 : vector<4xf32> to vector<1x1x4xf32>
      %69 = vector.broadcast %68 : vector<1x1x4xf32> to vector<16x16x4xf32>
      %70 = arith.mulf %65, %69 : vector<16x16x4xf32>
      %71 = arith.addf %64, %70 : vector<16x16x4xf32>
      %c2_67 = arith.constant 2 : index
      %c0_68 = arith.constant 0 : index
      %c0_69 = arith.constant 0 : index
      %72 = vector.load %arg9[%c2_67, %c0_68, %c0_69] : memref<18x16x4xf32, #tpu.memory_space<vmem>>, vector<16x16x4xf32>
      %73 = vector.extract_strided_slice %30 {offsets = [2, 0, 0], sizes = [1, 1, 4], strides = [1, 1, 1]} : vector<3x3x4xf32> to vector<1x1x4xf32>
      %74 = vector.shape_cast %73 : vector<1x1x4xf32> to vector<4xf32>
      %75 = vector.shape_cast %74 : vector<4xf32> to vector<1x1x4xf32>
      %76 = vector.broadcast %75 : vector<1x1x4xf32> to vector<16x16x4xf32>
      %77 = arith.mulf %72, %76 : vector<16x16x4xf32>
      %78 = arith.addf %71, %77 : vector<16x16x4xf32>
      %c2_70 = arith.constant 2 : index
      %c0_71 = arith.constant 0 : index
      %c0_72 = arith.constant 0 : index
      %79 = vector.load %arg10[%c2_70, %c0_71, %c0_72] : memref<18x16x4xf32, #tpu.memory_space<vmem>>, vector<16x16x4xf32>
      %80 = vector.extract_strided_slice %30 {offsets = [2, 1, 0], sizes = [1, 1, 4], strides = [1, 1, 1]} : vector<3x3x4xf32> to vector<1x1x4xf32>
      %81 = vector.shape_cast %80 : vector<1x1x4xf32> to vector<4xf32>
      %82 = vector.shape_cast %81 : vector<4xf32> to vector<1x1x4xf32>
      %83 = vector.broadcast %82 : vector<1x1x4xf32> to vector<16x16x4xf32>
      %84 = arith.mulf %79, %83 : vector<16x16x4xf32>
      %85 = arith.addf %78, %84 : vector<16x16x4xf32>
      %c2_73 = arith.constant 2 : index
      %c0_74 = arith.constant 0 : index
      %c0_75 = arith.constant 0 : index
      %86 = vector.load %arg11[%c2_73, %c0_74, %c0_75] : memref<18x16x4xf32, #tpu.memory_space<vmem>>, vector<16x16x4xf32>
      %87 = vector.extract_strided_slice %30 {offsets = [2, 2, 0], sizes = [1, 1, 4], strides = [1, 1, 1]} : vector<3x3x4xf32> to vector<1x1x4xf32>
      %88 = vector.shape_cast %87 : vector<1x1x4xf32> to vector<4xf32>
      %89 = vector.shape_cast %88 : vector<4xf32> to vector<1x1x4xf32>
      %90 = vector.broadcast %89 : vector<1x1x4xf32> to vector<16x16x4xf32>
      %91 = arith.mulf %86, %90 : vector<16x16x4xf32>
      %92 = arith.addf %85, %91 : vector<16x16x4xf32>
      %c0_76 = arith.constant 0 : index
      %c0_77 = arith.constant 0 : index
      %93 = vector.load %arg4[%c0_76, %c0_77] : memref<1x4xf32, #tpu.memory_space<vmem>>, vector<1x4xf32>
      %94 = vector.shape_cast %93 : vector<1x4xf32> to vector<1x1x4xf32>
      %95 = vector.broadcast %94 : vector<1x1x4xf32> to vector<16x16x4xf32>
      %96 = arith.addf %92, %95 : vector<16x16x4xf32>
      %cst_78 = arith.constant 0.000000e+00 : f32
      %97 = vector.broadcast %cst_78 : f32 to vector<16x16x4xf32>
      %98 = arith.maximumf %96, %97 : vector<16x16x4xf32>
      %99 = vector.shape_cast %98 : vector<16x16x4xf32> to vector<256x4xf32>
      %100 = arith.truncf %99 : vector<256x4xf32> to vector<256x4xbf16>
      %c0_79 = arith.constant 0 : index
      %c0_80 = arith.constant 0 : index
      %101 = vector.load %arg12[%c0_79, %c0_80] : memref<256x4xbf16, #tpu.memory_space<vmem>>, vector<256x4xbf16>
      tpu.vector_store %arg12[%c0_79, %c0_80], %100 {strides = array<i32>} : memref<256x4xbf16, #tpu.memory_space<vmem>>, vector<256x4xbf16>,
    } else {
    }
    %c0 = arith.constant 0 : index
    %c0_1 = arith.constant 0 : index
    %3 = vector.load %arg12[%c0, %c0_1] : memref<256x4xbf16, #tpu.memory_space<vmem>>, vector<256x4xbf16>
    %c0_2 = arith.constant 0 : index
    %c0_3 = arith.constant 0 : index
    %4 = vector.load %arg5[%c0_2, %c0_3] : memref<4x8xbf16, #tpu.memory_space<vmem>>, vector<4x8xbf16>
    %cst = arith.constant dense<0.000000e+00> : vector<256x8xf32>
    %5 = tpu.matmul %3, %4, %cst {dimension_numbers = #tpu.dot_dimension_numbers<[1], [0], [0], [1], [0, 0, 1, 1], [], []>} : vector<256x4xbf16>, vector<4x8xbf16>, vector<256x8xf32> -> vector<256x8xf32>
    %c0_4 = arith.constant 0 : index
    %c0_5 = arith.constant 0 : index
    %6 = vector.load %arg6[%c0_4, %c0_5] : memref<1x8xf32, #tpu.memory_space<vmem>>, vector<1x8xf32>
    %7 = vector.broadcast %6 : vector<1x8xf32> to vector<256x8xf32>
    %8 = arith.addf %5, %7 : vector<256x8xf32>
    %cst_6 = arith.constant 0.000000e+00 : f32
    %9 = vector.broadcast %cst_6 : f32 to vector<256x8xf32>
    %10 = arith.maximumf %8, %9 : vector<256x8xf32>
    %c0_7 = arith.constant 0 : index
    %c0_8 = arith.constant 0 : index
    %c0_9 = arith.constant 0 : index
    %11 = vector.load %arg7[%c0_7, %c0_8, %c0_9] : memref<1x256x8xf32, #tpu.memory_space<vmem>>, vector<1x256x8xf32>
    %12 = vector.shape_cast %11 : vector<1x256x8xf32> to vector<256x8xf32>
    %13 = vector.shape_cast %10 : vector<256x8xf32> to vector<1x256x8xf32>
    tpu.vector_store %arg7[%c0_7, %c0_8, %c0_9], %13 {strides = array<i32>} : memref<1x256x8xf32, #tpu.memory_space<vmem>>, vector<1x256x8xf32>,
    return
  }
  func.func @transform_0(%arg0: i32, %arg1: i32) -> (i32, i32, i32, i32) {
    %c0_i32 = arith.constant 0 : i32
    %c0_i32_0 = arith.constant 0 : i32
    %c0_i32_1 = arith.constant 0 : i32
    %c0_i32_2 = arith.constant 0 : i32
    return %arg0, %c0_i32, %c0_i32_0, %c0_i32_1 : i32, i32, i32, i32
  }
  func.func @transform_1(%arg0: i32, %arg1: i32) -> (i32, i32, i32) {
    %c0_i32 = arith.constant 0 : i32
    %c0_i32_0 = arith.constant 0 : i32
    %c0_i32_1 = arith.constant 0 : i32
    %c0_i32_2 = arith.constant 0 : i32
    return %c0_i32, %c0_i32_0, %c0_i32_1 : i32, i32, i32
  }
  func.func @transform_2(%arg0: i32, %arg1: i32) -> (i32, i32) {
    %c0_i32 = arith.constant 0 : i32
    %c0_i32_0 = arith.constant 0 : i32
    %c0_i32_1 = arith.constant 0 : i32
    return %c0_i32, %c0_i32_0 : i32, i32
  }
  func.func @transform_3(%arg0: i32, %arg1: i32) -> (i32, i32) {
    %c0_i32 = arith.constant 0 : i32
    %c0_i32_0 = arith.constant 0 : i32
    return %c0_i32, %arg1 : i32, i32
  }
  func.func @transform_4(%arg0: i32, %arg1: i32) -> (i32, i32) {
    %c0_i32 = arith.constant 0 : i32
    %c0_i32_0 = arith.constant 0 : i32
    return %c0_i32, %arg1 : i32, i32
  }
  func.func @transform_5(%arg0: i32, %arg1: i32) -> (i32, i32, i32) {
    %c0_i32 = arith.constant 0 : i32
    %c0_i32_0 = arith.constant 0 : i32
    return %arg0, %c0_i32, %arg1 : i32, i32, i32
  }
}

</mosaic_0001>

<llo_original>
// kernel: tpu_custom_call.1
$region0: #{tpu_custom_call.1}
  #allocation0 [shape = 'u32[]', space=smem, size = 0x4, offset = 0x4, fixed_abs, tag = 'smem constant byte address 0x4 - core index']
  #allocation1 [shape = 'u32[144,128]{1,0:T(1,128)}', space=vmem, size = 0x12000, scoped, tag = 'internal scratch']
  #allocation2 [shape = 'f32[18,18,4]{2,1,0:T(8,128)}', space=vmem, size = 0x36000, scoped, tag = 'scratch operand']
  #allocation3 [shape = 'f32[18,16,4]{2,1,0:T(8,128)}', space=vmem, size = 0x24000, scoped, tag = 'scratch operand']
  #allocation4 [shape = 'f32[18,16,4]{2,1,0:T(8,128)}', space=vmem, size = 0x24000, scoped, tag = 'scratch operand']
  #allocation5 [shape = 'f32[18,16,4]{2,1,0:T(8,128)}', space=vmem, size = 0x24000, scoped, tag = 'scratch operand']
  #allocation6 [shape = 'bf16[256,4]{1,0:T(16,128)(2,1)}', space=vmem, size = 0x10000, scoped, tag = 'scratch operand']
  %s0 = inlined_call_operand.vmem [shape: bf16[2,16,16,4], index: 0, kind: input, shape index: {}]
  %s1 = inlined_call_operand.vmem [shape: f32[3,3,4], index: 1, kind: input, shape index: {}]
  %s2 = inlined_call_operand.vmem [shape: f32[1,4], index: 2, kind: input, shape index: {}]
  %s3 = inlined_call_operand.vmem [shape: bf16[4,8], index: 3, kind: input, shape index: {}]
  %s4 = inlined_call_operand.vmem [shape: f32[1,8], index: 4, kind: input, shape index: {}]
  %s5 = inlined_call_operand.vmem [shape: f32[2,256,8], index: 5, kind: output, shape index: {}]
  %s6 = sld [smem:[#allocation0]]
  $region57: #{tpu_custom_call.1} parent=0
    _
  %s8 = ssub.s32 1, %s6
  %s9 = scalar_select 0, %s8, %s6
  loop: start=0, step=1, limit=4
  $region2: #{tpu_custom_call.1} parent=0 // loop_pre_header
    _
  $region3: #{tpu_custom_call.1} parent=0 // loop_header
    %s11 = sphi 0, %s15
    %p12 = scmp.ge.s32.totalorder %s11, 4
    %s18 = sphi 0, %s30
    %s19 = sphi 0, %s26
    %s20 = sphi 0, %s18
    %s21 = sphi 0, %s19
    %s22 = sphi 0, %s20
    %s23 = sphi 0, %s21
    %s33 = sphi 0, %s35
    %s36 = sphi 0, %s33
    %s37 = sphi 0, %s36
    %s53 = sphi 0, %s37
    %s57 = sphi 0, %s57
    %s59 = sphi 0, %s57
    %s60 = sphi 0, %s59
    %s74 = sphi 0, %s60
    %s78 = sphi 0, %s78
    %s80 = sphi 0, %s78
    %s81 = sphi 0, %s80
    %s95 = sphi 0, %s81
    %s101 = sphi 0, %s103
    %s104 = sphi 0, %s101
    %s105 = sphi 0, %s104
    %s121 = sphi 0, %s105
    %s127 = sphi 0, %s129
    %s130 = sphi 0, %s127
    %s131 = sphi 0, %s130
    %s147 = sphi 0, %s131
    %s155 = sphi 0, %s157
    %s158 = sphi 0, %s155
    %s159 = sphi 0, %s158
    %s175 = sphi 0, %s159
  $region4: #{tpu_custom_call.1} parent=0 // loop_header_branch
    %14 = sbr.rel (%p12) target = $region8
  $region5: #{tpu_custom_call.1} parent=0 // loop_body
    %s16 = ssub.s32 %s11, 1
    %s17 = ssub.s32 %s11, 2
    %s24 = sadd.s32 1, %s19
    %p25 = scmp.ge.s32.totalorder %s24, 1
    %s26 = scalar_select %p25, 0, %s24
    %s27 = sadd.s32 1, %s18
    %s28 = scalar_select %p25, %s27, %s18
    %p29 = scmp.ge.s32.totalorder %s28, 2
    %s30 = scalar_select %p29, 0, %s28
    %s31 = ssub.s32 %s18, %s30
    %p32 = scmp.eq.s32.totalorder %s31, 0
    %s34 = sadd.s32 %s33, 1
    %s35 = scalar_select %p32, %s33, %s34
    %p38 = pneg %p32
    %p39 = scmp.eq.s32.totalorder %s11, 1
    %p40 = por %p38, %p39
    %p41 = scmp.ne.s32.totalorder %s33, %s36
    %p42 = scmp.eq.s32.totalorder %s11, 0
    %p43 = por %p41, %p42
    %p44 = scmp.ne.s32.totalorder %s33, %s36
    %p45 = scmp.eq.s32.totalorder %s16, 1
    %p46 = por %p44, %p45
    %p47 = scmp.ne.s32.totalorder %s36, %s37
    %p48 = scmp.eq.s32.totalorder %s16, 0
    %p49 = por %p47, %p48
    %p50 = scmp.ne.s32.totalorder %s36, %s37
    %p51 = scmp.eq.s32.totalorder %s17, 1
    %p52 = por %p50, %p51
    %p54 = scmp.ne.s32.totalorder %s37, %s53
    %p55 = scmp.eq.s32.totalorder %s17, 0
    %p56 = por %p54, %p55
    %s58 = sadd.s32 %s57, 1
    %p61 = scmp.eq.s32.totalorder %s11, 1
    %p62 = scmp.ne.s32.totalorder %s57, %s59
    %p63 = scmp.eq.s32.totalorder %s11, 0
    %p64 = por %p62, %p63
    %p65 = scmp.ne.s32.totalorder %s57, %s59
    %p66 = scmp.eq.s32.totalorder %s16, 1
    %p67 = por %p65, %p66
    %p68 = scmp.ne.s32.totalorder %s59, %s60
    %p69 = scmp.eq.s32.totalorder %s16, 0
    %p70 = por %p68, %p69
    %p71 = scmp.ne.s32.totalorder %s59, %s60
    %p72 = scmp.eq.s32.totalorder %s17, 1
    %p73 = por %p71, %p72
    %p75 = scmp.ne.s32.totalorder %s60, %s74
    %p76 = scmp.eq.s32.totalorder %s17, 0
    %p77 = por %p75, %p76
    %s79 = sadd.s32 %s78, 1
    %p82 = scmp.eq.s32.totalorder %s11, 1
    %p83 = scmp.ne.s32.totalorder %s78, %s80
    %p84 = scmp.eq.s32.totalorder %s11, 0
    %p85 = por %p83, %p84
    %p86 = scmp.ne.s32.totalorder %s78, %s80
    %p87 = scmp.eq.s32.totalorder %s16, 1
    %p88 = por %p86, %p87
    %p89 = scmp.ne.s32.totalorder %s80, %s81
    %p90 = scmp.eq.s32.totalorder %s16, 0
    %p91 = por %p89, %p90
    %p92 = scmp.ne.s32.totalorder %s80, %s81
    %p93 = scmp.eq.s32.totalorder %s17, 1
    %p94 = por %p92, %p93
    %p96 = scmp.ne.s32.totalorder %s81, %s95
    %p97 = scmp.eq.s32.totalorder %s17, 0
    %p98 = por %p96, %p97
    %s99 = ssub.s32 %s19, %s26
    %p100 = scmp.eq.s32.totalorder %s99, 0
    %s102 = sadd.s32 %s101, 1
    %s103 = scalar_select %p100, %s101, %s102
    %p106 = pneg %p100
    %p107 = scmp.eq.s32.totalorder %s11, 1
    %p108 = por %p106, %p107
    %p109 = scmp.ne.s32.totalorder %s101, %s104
    %p110 = scmp.eq.s32.totalorder %s11, 0
    %p111 = por %p109, %p110
    %p112 = scmp.ne.s32.totalorder %s101, %s104
    %p113 = scmp.eq.s32.totalorder %s16, 1
    %p114 = por %p112, %p113
    %p115 = scmp.ne.s32.totalorder %s104, %s105
    %p116 = scmp.eq.s32.totalorder %s16, 0
    %p117 = por %p115, %p116
    %p118 = scmp.ne.s32.totalorder %s104, %s105
    %p119 = scmp.eq.s32.totalorder %s17, 1
    %p120 = por %p118, %p119
    %p122 = scmp.ne.s32.totalorder %s105, %s121
    %p123 = scmp.eq.s32.totalorder %s17, 0
    %p124 = por %p122, %p123
    %s125 = ssub.s32 %s19, %s26
    %p126 = scmp.eq.s32.totalorder %s125, 0
    %s128 = sadd.s32 %s127, 1
    %s129 = scalar_select %p126, %s127, %s128
    %p132 = pneg %p126
    %p133 = scmp.eq.s32.totalorder %s11, 1
    %p134 = por %p132, %p133
    %p135 = scmp.ne.s32.totalorder %s127, %s130
    %p136 = scmp.eq.s32.totalorder %s11, 0
    %p137 = por %p135, %p136
    %p138 = scmp.ne.s32.totalorder %s127, %s130
    %p139 = scmp.eq.s32.totalorder %s16, 1
    %p140 = por %p138, %p139
    %p141 = scmp.ne.s32.totalorder %s130, %s131
    %p142 = scmp.eq.s32.totalorder %s16, 0
    %p143 = por %p141, %p142
    %p144 = scmp.ne.s32.totalorder %s130, %s131
    %p145 = scmp.eq.s32.totalorder %s17, 1
    %p146 = por %p144, %p145
    %p148 = scmp.ne.s32.totalorder %s131, %s147
    %p149 = scmp.eq.s32.totalorder %s17, 0
    %p150 = por %p148, %p149
    %s151 = ssub.s32 %s18, %s30
    %s152 = ssub.s32 %s19, %s26
    %s153 = sor.u32 %s151, %s152
    %p154 = scmp.eq.s32.totalorder %s153, 0
    %s156 = sadd.s32 %s155, 1
    %s157 = scalar_select %p154, %s155, %s156
    %p160 = pneg %p154
    %p161 = scmp.eq.s32.totalorder %s11, 1
    %p162 = por %p160, %p161
    %p163 = scmp.ne.s32.totalorder %s155, %s158
    %p164 = scmp.eq.s32.totalorder %s11, 0
    %p165 = por %p163, %p164
    %p166 = scmp.ne.s32.totalorder %s155, %s158
    %p167 = scmp.eq.s32.totalorder %s16, 1
    %p168 = por %p166, %p167
    %p169 = scmp.ne.s32.totalorder %s158, %s159
    %p170 = scmp.eq.s32.totalorder %s16, 0
    %p171 = por %p169, %p170
    %p172 = scmp.ne.s32.totalorder %s158, %s159
    %p173 = scmp.eq.s32.totalorder %s17, 1
    %p174 = por %p172, %p173
    %p176 = scmp.ne.s32.totalorder %s159, %s175
    %p177 = scmp.eq.s32.totalorder %s17, 0
    %p178 = por %p176, %p177
    %p179 = scmp.le.s32.totalorder 1, %s11
    %p180 = scmp.lt.s32.totalorder %s11, 3
    %p181 = pnand %p179, %p180
    %p182 = pneg %p181
    // Predicated region
    $region9: #{tpu_custom_call.1} parent=5 // pred_check
      _
    $region10: #{tpu_custom_call.1} parent=5 // pred_check_branch
      %184 = sbr.rel (%p181) target = $region12
    $region11: #{tpu_custom_call.1} parent=5 // pred_region
      %s185 = ssub.s32 %s11, 1
      // Predicated region
      $region13: #{tpu_custom_call.1} parent=11 // pred_check
        %p186 = pneg %p70
      $region14: #{tpu_custom_call.1} parent=11 // pred_check_branch
        %188 = sbr.rel (%p186) target = $region16
      $region15: #{tpu_custom_call.1} parent=11 // pred_region
        _
      $region16: #{tpu_custom_call.1} parent=11 // pred_fallthru
        _
      // Predicated region
      $region17: #{tpu_custom_call.1} parent=11 // pred_check
        %p189 = pneg %p91
      $region18: #{tpu_custom_call.1} parent=11 // pred_check_branch
        %191 = sbr.rel (%p189) target = $region20
      $region19: #{tpu_custom_call.1} parent=11 // pred_region
        _
      $region20: #{tpu_custom_call.1} parent=11 // pred_fallthru
        _
      // Predicated region
      $region21: #{tpu_custom_call.1} parent=11 // pred_check
        %p192 = pneg %p117
      $region22: #{tpu_custom_call.1} parent=11 // pred_check_branch
        %194 = sbr.rel (%p192) target = $region24
      $region23: #{tpu_custom_call.1} parent=11 // pred_region
        %p195 = scmp.lt.s32.totalorder %s21, 0
        %s196 = scalar_select %p195, %s21, 0
        %s197 = smul.addr %s196, 2
        %s198 = scalar_lea.vmem %s3, %s197
      $region24: #{tpu_custom_call.1} parent=11 // pred_fallthru
        _
      // Predicated region
      $region25: #{tpu_custom_call.1} parent=11 // pred_check
        %p199 = pneg %p143
      $region26: #{tpu_custom_call.1} parent=11 // pred_check_branch
        %201 = sbr.rel (%p199) target = $region28
      $region27: #{tpu_custom_call.1} parent=11 // pred_region
        %p202 = scmp.lt.s32.totalorder %s21, 0
        %s203 = scalar_select %p202, %s21, 0
        %s204 = scalar_lea.vmem %s4, %s203
      $region28: #{tpu_custom_call.1} parent=11 // pred_fallthru
        _
    $region12: #{tpu_custom_call.1} parent=5 // pred_fallthru
      _
    %p205 = scmp.lt.s32.totalorder %s11, 2
    // Predicated region
    $region29: #{tpu_custom_call.1} parent=5 // pred_check
      %p206 = pneg %p205
    $region30: #{tpu_custom_call.1} parent=5 // pred_check_branch
      %208 = sbr.rel (%p206) target = $region32
    $region31: #{tpu_custom_call.1} parent=5 // pred_region
      // Predicated region
      $region33: #{tpu_custom_call.1} parent=31 // pred_check
        %p209 = pneg %p43
      $region34: #{tpu_custom_call.1} parent=31 // pred_check_branch
        %211 = sbr.rel (%p209) target = $region36
      $region35: #{tpu_custom_call.1} parent=31 // pred_region
        %p212 = scmp.lt.s32.totalorder %s18, 1
        %s213 = scalar_select %p212, %s18, 1
        %s214 = smul.addr %s213, 32
        %s215 = smul.addr %s214, 4
        %s216 = scalar_lea.vmem %s0, %s215
      $region36: #{tpu_custom_call.1} parent=31 // pred_fallthru
        _
    $region32: #{tpu_custom_call.1} parent=5 // pred_fallthru
      _
    %p217 = scmp.le.s32.totalorder 1, %s11
    %p218 = scmp.lt.s32.totalorder %s11, 3
    %p219 = pnand %p217, %p218
    %p220 = pneg %p219
    // Predicated region
    $region37: #{tpu_custom_call.1} parent=5 // pred_check
      _
    $region38: #{tpu_custom_call.1} parent=5 // pred_check_branch
      %222 = sbr.rel (%p219) target = $region40
    $region39: #{tpu_custom_call.1} parent=5 // pred_region
      %s223 = ssub.s32 %s11, 1
      %p224 = scmp.lt.s32.totalorder %s20, 1
      %s225 = scalar_select %p224, %s20, 1
      %s226 = smul.addr %s225, 32
      %s227 = smul.addr %s226, 4
      %s228 = scalar_lea.vmem %s0, %s227
      %p229 = pneg %p49
      %p230 = pneg %p46
      %p231 = pneg %p70
      %p232 = pneg %p67
      %p233 = pneg %p91
      %p234 = pneg %p88
      %p235 = scmp.lt.s32.totalorder %s21, 0
      %s236 = scalar_select %p235, %s21, 0
      %s237 = smul.addr %s236, 2
      %s238 = scalar_lea.vmem %s3, %s237
      %p239 = pneg %p117
      %p240 = pneg %p114
      %p241 = scmp.lt.s32.totalorder %s21, 0
      %s242 = scalar_select %p241, %s21, 0
      %s243 = scalar_lea.vmem %s4, %s242
      %p244 = pneg %p143
      %p245 = pneg %p140
      %p246 = pneg %p171
      %p247 = pneg %p168
      %p248 = scmp.lt.s32.totalorder %s20, 1
      %s249 = scalar_select %p248, %s20, 1
      %p250 = scmp.lt.s32.totalorder %s21, 0
      %s251 = scalar_select %p250, %s21, 0
      %s252 = smul.addr %s249, 32
      %s253 = sadd.s32 %s251, %s252
      %s254 = smul.addr %s253, 8
      %s255 = scalar_lea.vmem %s5, %s254
      %p256 = scmp.lt.s32.totalorder %s20, 1
      %s257 = scalar_select %p256, %s20, 1
      %s258 = smul.addr %s257, 32
      %s259 = smul.addr %s258, 4
      %s260 = scalar_lea.vmem %s0, %s259
      %p261 = scmp.lt.s32.totalorder %s21, 0
      %s262 = scalar_select %p261, %s21, 0
      %s263 = smul.addr %s262, 2
      %s264 = scalar_lea.vmem %s3, %s263
      %p265 = scmp.lt.s32.totalorder %s21, 0
      %s266 = scalar_select %p265, %s21, 0
      %s267 = scalar_lea.vmem %s4, %s266
      %p268 = scmp.lt.s32.totalorder %s20, 1
      %s269 = scalar_select %p268, %s20, 1
      %p270 = scmp.lt.s32.totalorder %s21, 0
      %s271 = scalar_select %p270, %s21, 0
      %s272 = smul.addr %s269, 32
      %s273 = sadd.s32 %s271, %s272
      %s274 = smul.addr %s273, 8
      %s275 = scalar_lea.vmem %s5, %s274
      %p277 = scmp.eq.s32.totalorder %s21, 0
      // Predicated region
      $region41: #{tpu_custom_call.1} parent=39 // pred_check
        %p278 = pneg %p277
      $region42: #{tpu_custom_call.1} parent=39 // pred_check_branch
        %280 = sbr.rel (%p278) target = $region44
      $region43: #{tpu_custom_call.1} parent=39 // pred_region
        %v281 = vld [vmem:[%s260] sm:$0xf]
        %v282 = vld [vmem:[%s260 + $0x4] sm:$0xf]
        %v283 = vld [vmem:[%s260 + $0x8] sm:$0xf]
        %v284 = vld [vmem:[%s260 + $0xc] sm:$0xf]
        %v285 = vld [vmem:[%s260 + $0x10] sm:$0xf]
        %v286 = vld [vmem:[%s260 + $0x14] sm:$0xf]
        %v287 = vld [vmem:[%s260 + $0x18] sm:$0xf]
        %v288 = vld [vmem:[%s260 + $0x1c] sm:$0xf]
        %v289 = vld [vmem:[%s260 + $0x20] sm:$0xf]
        %v290 = vld [vmem:[%s260 + $0x24] sm:$0xf]
        %v291 = vld [vmem:[%s260 + $0x28] sm:$0xf]
        %v292 = vld [vmem:[%s260 + $0x2c] sm:$0xf]
        %v293 = vld [vmem:[%s260 + $0x30] sm:$0xf]
        %v294 = vld [vmem:[%s260 + $0x34] sm:$0xf]
        %v295 = vld [vmem:[%s260 + $0x38] sm:$0xf]
        %v296 = vld [vmem:[%s260 + $0x3c] sm:$0xf]
        %v297 = vld [vmem:[%s260 + $0x40] sm:$0xf]
        %v298 = vld [vmem:[%s260 + $0x44] sm:$0xf]
        %v299 = vld [vmem:[%s260 + $0x48] sm:$0xf]
        %v300 = vld [vmem:[%s260 + $0x4c] sm:$0xf]
        %v301 = vld [vmem:[%s260 + $0x50] sm:$0xf]
        %v302 = vld [vmem:[%s260 + $0x54] sm:$0xf]
        %v303 = vld [vmem:[%s260 + $0x58] sm:$0xf]
        %v304 = vld [vmem:[%s260 + $0x5c] sm:$0xf]
        %v305 = vld [vmem:[%s260 + $0x60] sm:$0xf]
        %v306 = vld [vmem:[%s260 + $0x64] sm:$0xf]
        %v307 = vld [vmem:[%s260 + $0x68] sm:$0xf]
        %v308 = vld [vmem:[%s260 + $0x6c] sm:$0xf]
        %v309 = vld [vmem:[%s260 + $0x70] sm:$0xf]
        %v310 = vld [vmem:[%s260 + $0x74] sm:$0xf]
        %v311 = vld [vmem:[%s260 + $0x78] sm:$0xf]
        %v312 = vld [vmem:[%s260 + $0x7c] sm:$0xf]
        %v313 = vunpack.c.l.bf16 %v281
        %v314 = vunpack.c.l.bf16 %v282
        %v315 = vunpack.c.l.bf16 %v283
        %v316 = vunpack.c.l.bf16 %v284
        %v317 = vunpack.c.l.bf16 %v285
        %v318 = vunpack.c.l.bf16 %v286
        %v319 = vunpack.c.l.bf16 %v287
        %v320 = vunpack.c.l.bf16 %v288
        %v321 = vunpack.c.l.bf16 %v289
        %v322 = vunpack.c.l.bf16 %v290
        %v323 = vunpack.c.l.bf16 %v291
        %v324 = vunpack.c.l.bf16 %v292
        %v325 = vunpack.c.l.bf16 %v293
        %v326 = vunpack.c.l.bf16 %v294
        %v327 = vunpack.c.l.bf16 %v295
        %v328 = vunpack.c.l.bf16 %v296
        %v329 = vunpack.c.l.bf16 %v297
        %v330 = vunpack.c.l.bf16 %v298
        %v331 = vunpack.c.l.bf16 %v299
        %v332 = vunpack.c.l.bf16 %v300
        %v333 = vunpack.c.l.bf16 %v301
        %v334 = vunpack.c.l.bf16 %v302
        %v335 = vunpack.c.l.bf16 %v303
        %v336 = vunpack.c.l.bf16 %v304
        %v337 = vunpack.c.l.bf16 %v305
        %v338 = vunpack.c.l.bf16 %v306
        %v339 = vunpack.c.l.bf16 %v307
        %v340 = vunpack.c.l.bf16 %v308
        %v341 = vunpack.c.l.bf16 %v309
        %v342 = vunpack.c.l.bf16 %v310
        %v343 = vunpack.c.l.bf16 %v311
        %v344 = vunpack.c.l.bf16 %v312
        %s345 = scalar_lea.vmem [#allocation2], 24
        %vm346 = vcmask 31744
        %347 = vst.msk [vmem:[%s345 + $0x1] sm:$0xff] %vm346, %v313
        %348 = vst.msk [vmem:[%s345 + $0x9] sm:$0xff] %vm346, %v314
        %349 = vst.msk [vmem:[%s345 + $0x19] sm:$0xff] %vm346, %v315
        %350 = vst.msk [vmem:[%s345 + $0x21] sm:$0xff] %vm346, %v316
        %351 = vst.msk [vmem:[%s345 + $0x31] sm:$0xff] %vm346, %v317
        %352 = vst.msk [vmem:[%s345 + $0x39] sm:$0xff] %vm346, %v318
        %353 = vst.msk [vmem:[%s345 + $0x49] sm:$0xff] %vm346, %v319
        %354 = vst.msk [vmem:[%s345 + $0x51] sm:$0xff] %vm346, %v320
        %355 = vst.msk [vmem:[%s345 + $0x61] sm:$0xff] %vm346, %v321
        %356 = vst.msk [vmem:[%s345 + $0x69] sm:$0xff] %vm346, %v322
        %357 = vst.msk [vmem:[%s345 + $0x79] sm:$0xff] %vm346, %v323
        %358 = vst.msk [vmem:[%s345 + $0x81] sm:$0xff] %vm346, %v324
        %359 = vst.msk [vmem:[%s345 + $0x91] sm:$0xff] %vm346, %v325
        %360 = vst.msk [vmem:[%s345 + $0x99] sm:$0xff] %vm346, %v326
        %361 = vst.msk [vmem:[%s345 + $0xa9] sm:$0xff] %vm346, %v327
        %362 = vst.msk [vmem:[%s345 + $0xb1] sm:$0xff] %vm346, %v328
        %363 = vst.msk [vmem:[%s345 + $0xc1] sm:$0xff] %vm346, %v329
        %364 = vst.msk [vmem:[%s345 + $0xc9] sm:$0xff] %vm346, %v330
        %365 = vst.msk [vmem:[%s345 + $0xd9] sm:$0xff] %vm346, %v331
        %366 = vst.msk [vmem:[%s345 + $0xe1] sm:$0xff] %vm346, %v332
        %367 = vst.msk [vmem:[%s345 + $0xf1] sm:$0xff] %vm346, %v333
        %368 = vst.msk [vmem:[%s345 + $0xf9] sm:$0xff] %vm346, %v334
        %369 = vst.msk [vmem:[%s345 + $0x109] sm:$0xff] %vm346, %v335
        %370 = vst.msk [vmem:[%s345 + $0x111] sm:$0xff] %vm346, %v336
        %371 = vst.msk [vmem:[%s345 + $0x121] sm:$0xff] %vm346, %v337
        %372 = vst.msk [vmem:[%s345 + $0x129] sm:$0xff] %vm346, %v338
        %373 = vst.msk [vmem:[%s345 + $0x139] sm:$0xff] %vm346, %v339
        %374 = vst.msk [vmem:[%s345 + $0x141] sm:$0xff] %vm346, %v340
        %375 = vst.msk [vmem:[%s345 + $0x151] sm:$0xff] %vm346, %v341
        %376 = vst.msk [vmem:[%s345 + $0x159] sm:$0xff] %vm346, %v342
        %377 = vst.msk [vmem:[%s345 + $0x169] sm:$0xff] %vm346, %v343
        %378 = vst.msk [vmem:[%s345 + $0x171] sm:$0xff] %vm346, %v344
        %379 = vst.msk [vmem:[#allocation2] sm:$0xff] %vm346, 0.0
        %380 = vst.msk [vmem:[#allocation2 + $0x8] sm:$0xff] %vm346, 0.0
        %vm381 = vcmask 25600
        %382 = vst.msk [vmem:[#allocation2 + $0x10] sm:$0x3] %vm381, 0.0
        %s383 = scalar_lea.vmem [#allocation2], 408
        %384 = vst.msk [vmem:[%s383] sm:$0xff] %vm346, 0.0
        %385 = vst.msk [vmem:[%s383 + $0x8] sm:$0xff] %vm346, 0.0
        %386 = vst.msk [vmem:[%s383 + $0x10] sm:$0x3] %vm381, 0.0
        %vm387 = vcmask 24576
        %388 = vst.msk [vmem:[#allocation2] sm:$0x1] %vm387, 0.0
        %389 = vst.msk [vmem:[#allocation2 + $0x18] sm:$0x1] %vm387, 0.0
        %390 = vst.msk [vmem:[#allocation2 + $0x30] sm:$0x1] %vm387, 0.0
        %391 = vst.msk [vmem:[#allocation2 + $0x48] sm:$0x1] %vm387, 0.0
        %392 = vst.msk [vmem:[#allocation2 + $0x60] sm:$0x1] %vm387, 0.0
        %393 = vst.msk [vmem:[#allocation2 + $0x78] sm:$0x1] %vm387, 0.0
        %394 = vst.msk [vmem:[#allocation2 + $0x90] sm:$0x1] %vm387, 0.0
        %395 = vst.msk [vmem:[#allocation2 + $0xa8] sm:$0x1] %vm387, 0.0
        %396 = vst.msk [vmem:[#allocation2 + $0xc0] sm:$0x1] %vm387, 0.0
        %397 = vst.msk [vmem:[#allocation2 + $0xd8] sm:$0x1] %vm387, 0.0
        %398 = vst.msk [vmem:[#allocation2 + $0xf0] sm:$0x1] %vm387, 0.0
        %399 = vst.msk [vmem:[#allocation2 + $0x108] sm:$0x1] %vm387, 0.0
        %400 = vst.msk [vmem:[#allocation2 + $0x120] sm:$0x1] %vm387, 0.0
        %401 = vst.msk [vmem:[#allocation2 + $0x138] sm:$0x1] %vm387, 0.0
        %402 = vst.msk [vmem:[#allocation2 + $0x150] sm:$0x1] %vm387, 0.0
        %403 = vst.msk [vmem:[#allocation2 + $0x168] sm:$0x1] %vm387, 0.0
        %404 = vst.msk [vmem:[#allocation2 + $0x180] sm:$0x1] %vm387, 0.0
        %405 = vst.msk [vmem:[#allocation2 + $0x198] sm:$0x1] %vm387, 0.0
        %406 = vst.msk [vmem:[#allocation2 + $0x11] sm:$0x1] %vm387, 0.0
        %407 = vst.msk [vmem:[#allocation2 + $0x29] sm:$0x1] %vm387, 0.0
        %408 = vst.msk [vmem:[#allocation2 + $0x41] sm:$0x1] %vm387, 0.0
        %409 = vst.msk [vmem:[#allocation2 + $0x59] sm:$0x1] %vm387, 0.0
        %410 = vst.msk [vmem:[#allocation2 + $0x71] sm:$0x1] %vm387, 0.0
        %411 = vst.msk [vmem:[#allocation2 + $0x89] sm:$0x1] %vm387, 0.0
        %412 = vst.msk [vmem:[#allocation2 + $0xa1] sm:$0x1] %vm387, 0.0
        %413 = vst.msk [vmem:[#allocation2 + $0xb9] sm:$0x1] %vm387, 0.0
        %414 = vst.msk [vmem:[#allocation2 + $0xd1] sm:$0x1] %vm387, 0.0
        %415 = vst.msk [vmem:[#allocation2 + $0xe9] sm:$0x1] %vm387, 0.0
        %416 = vst.msk [vmem:[#allocation2 + $0x101] sm:$0x1] %vm387, 0.0
        %417 = vst.msk [vmem:[#allocation2 + $0x119] sm:$0x1] %vm387, 0.0
        %418 = vst.msk [vmem:[#allocation2 + $0x131] sm:$0x1] %vm387, 0.0
        %419 = vst.msk [vmem:[#allocation2 + $0x149] sm:$0x1] %vm387, 0.0
        %420 = vst.msk [vmem:[#allocation2 + $0x161] sm:$0x1] %vm387, 0.0
        %421 = vst.msk [vmem:[#allocation2 + $0x179] sm:$0x1] %vm387, 0.0
        %422 = vst.msk [vmem:[#allocation2 + $0x191] sm:$0x1] %vm387, 0.0
        %423 = vst.msk [vmem:[#allocation2 + $0x1a9] sm:$0x1] %vm387, 0.0
        %v424 = vld [vmem:[#allocation2] sm:$0xff]
        %v425 = vld [vmem:[#allocation2 + $0x8] sm:$0xff]
        %v426 = vld [vmem:[#allocation2 + $0x18] sm:$0xff]
        %v427 = vld [vmem:[#allocation2 + $0x20] sm:$0xff]
        %v428 = vld [vmem:[#allocation2 + $0x30] sm:$0xff]
        %v429 = vld [vmem:[#allocation2 + $0x38] sm:$0xff]
        %v430 = vld [vmem:[#allocation2 + $0x48] sm:$0xff]
        %v431 = vld [vmem:[#allocation2 + $0x50] sm:$0xff]
        %v432 = vld [vmem:[#allocation2 + $0x60] sm:$0xff]
        %v433 = vld [vmem:[#allocation2 + $0x68] sm:$0xff]
        %v434 = vld [vmem:[#allocation2 + $0x78] sm:$0xff]
        %v435 = vld [vmem:[#allocation2 + $0x80] sm:$0xff]
        %v436 = vld [vmem:[#allocation2 + $0x90] sm:$0xff]
        %v437 = vld [vmem:[#allocation2 + $0x98] sm:$0xff]
        %v438 = vld [vmem:[#allocation2 + $0xa8] sm:$0xff]
        %v439 = vld [vmem:[#allocation2 + $0xb0] sm:$0xff]
        %v440 = vld [vmem:[#allocation2 + $0xc0] sm:$0xff]
        %v441 = vld [vmem:[#allocation2 + $0xc8] sm:$0xff]
        %v442 = vld [vmem:[#allocation2 + $0xd8] sm:$0xff]
        %v443 = vld [vmem:[#allocation2 + $0xe0] sm:$0xff]
        %v444 = vld [vmem:[#allocation2 + $0xf0] sm:$0xff]
        %v445 = vld [vmem:[#allocation2 + $0xf8] sm:$0xff]
        %v446 = vld [vmem:[#allocation2 + $0x108] sm:$0xff]
        %v447 = vld [vmem:[#allocation2 + $0x110] sm:$0xff]
        %v448 = vld [vmem:[#allocation2 + $0x120] sm:$0xff]
        %v449 = vld [vmem:[#allocation2 + $0x128] sm:$0xff]
        %v450 = vld [vmem:[#allocation2 + $0x138] sm:$0xff]
        %v451 = vld [vmem:[#allocation2 + $0x140] sm:$0xff]
        %v452 = vld [vmem:[#allocation2 + $0x150] sm:$0xff]
        %v453 = vld [vmem:[#allocation2 + $0x158] sm:$0xff]
        %v454 = vld [vmem:[#allocation2 + $0x168] sm:$0xff]
        %v455 = vld [vmem:[#allocation2 + $0x170] sm:$0xff]
        %v456 = vld [vmem:[#allocation2 + $0x180] sm:$0xff]
        %v457 = vld [vmem:[#allocation2 + $0x188] sm:$0xff]
        %v458 = vld [vmem:[#allocation2 + $0x198] sm:$0xff]
        %v459 = vld [vmem:[#allocation2 + $0x1a0] sm:$0xff]
        %460 = vst.msk [vmem:[#allocation3] sm:$0xff] %vm346, %v424
        %461 = vst.msk [vmem:[#allocation3 + $0x8] sm:$0xff] %vm346, %v425
        %462 = vst.msk [vmem:[#allocation3 + $0x10] sm:$0xff] %vm346, %v426
        %463 = vst.msk [vmem:[#allocation3 + $0x18] sm:$0xff] %vm346, %v427
        %464 = vst.msk [vmem:[#allocation3 + $0x20] sm:$0xff] %vm346, %v428
        %465 = vst.msk [vmem:[#allocation3 + $0x28] sm:$0xff] %vm346, %v429
        %466 = vst.msk [vmem:[#allocation3 + $0x30] sm:$0xff] %vm346, %v430
        %467 = vst.msk [vmem:[#allocation3 + $0x38] sm:$0xff] %vm346, %v431
        %468 = vst.msk [vmem:[#allocation3 + $0x40] sm:$0xff] %vm346, %v432
        %469 = vst.msk [vmem:[#allocation3 + $0x48] sm:$0xff] %vm346, %v433
        %470 = vst.msk [vmem:[#allocation3 + $0x50] sm:$0xff] %vm346, %v434
        %471 = vst.msk [vmem:[#allocation3 + $0x58] sm:$0xff] %vm346, %v435
        %472 = vst.msk [vmem:[#allocation3 + $0x60] sm:$0xff] %vm346, %v436
        %473 = vst.msk [vmem:[#allocation3 + $0x68] sm:$0xff] %vm346, %v437
        %474 = vst.msk [vmem:[#allocation3 + $0x70] sm:$0xff] %vm346, %v438
        %475 = vst.msk [vmem:[#allocation3 + $0x78] sm:$0xff] %vm346, %v439
        %476 = vst.msk [vmem:[#allocation3 + $0x80] sm:$0xff] %vm346, %v440
        %477 = vst.msk [vmem:[#allocation3 + $0x88] sm:$0xff] %vm346, %v441
        %478 = vst.msk [vmem:[#allocation3 + $0x90] sm:$0xff] %vm346, %v442
        %479 = vst.msk [vmem:[#allocation3 + $0x98] sm:$0xff] %vm346, %v443
        %480 = vst.msk [vmem:[#allocation3 + $0xa0] sm:$0xff] %vm346, %v444
        %481 = vst.msk [vmem:[#allocation3 + $0xa8] sm:$0xff] %vm346, %v445
        %482 = vst.msk [vmem:[#allocation3 + $0xb0] sm:$0xff] %vm346, %v446
        %483 = vst.msk [vmem:[#allocation3 + $0xb8] sm:$0xff] %vm346, %v447
        %484 = vst.msk [vmem:[#allocation3 + $0xc0] sm:$0xff] %vm346, %v448
        %485 = vst.msk [vmem:[#allocation3 + $0xc8] sm:$0xff] %vm346, %v449
        %486 = vst.msk [vmem:[#allocation3 + $0xd0] sm:$0xff] %vm346, %v450
        %487 = vst.msk [vmem:[#allocation3 + $0xd8] sm:$0xff] %vm346, %v451
        %488 = vst.msk [vmem:[#allocation3 + $0xe0] sm:$0xff] %vm346, %v452
        %489 = vst.msk [vmem:[#allocation3 + $0xe8] sm:$0xff] %vm346, %v453
        %490 = vst.msk [vmem:[#allocation3 + $0xf0] sm:$0xff] %vm346, %v454
        %491 = vst.msk [vmem:[#allocation3 + $0xf8] sm:$0xff] %vm346, %v455
        %492 = vst.msk [vmem:[#allocation3 + $0x100] sm:$0xff] %vm346, %v456
        %493 = vst.msk [vmem:[#allocation3 + $0x108] sm:$0xff] %vm346, %v457
        %494 = vst.msk [vmem:[#allocation3 + $0x110] sm:$0xff] %vm346, %v458
        %495 = vst.msk [vmem:[#allocation3 + $0x118] sm:$0xff] %vm346, %v459
        %v496 = vld [vmem:[#allocation2 + $0x1] sm:$0xff]
        %v497 = vld [vmem:[#allocation2 + $0x9] sm:$0xff]
        %v498 = vld [vmem:[#allocation2 + $0x19] sm:$0xff]
        %v499 = vld [vmem:[#allocation2 + $0x21] sm:$0xff]
        %v500 = vld [vmem:[#allocation2 + $0x31] sm:$0xff]
        %v501 = vld [vmem:[#allocation2 + $0x39] sm:$0xff]
        %v502 = vld [vmem:[#allocation2 + $0x49] sm:$0xff]
        %v503 = vld [vmem:[#allocation2 + $0x51] sm:$0xff]
        %v504 = vld [vmem:[#allocation2 + $0x61] sm:$0xff]
        %v505 = vld [vmem:[#allocation2 + $0x69] sm:$0xff]
        %v506 = vld [vmem:[#allocation2 + $0x79] sm:$0xff]
        %v507 = vld [vmem:[#allocation2 + $0x81] sm:$0xff]
        %v508 = vld [vmem:[#allocation2 + $0x91] sm:$0xff]
        %v509 = vld [vmem:[#allocation2 + $0x99] sm:$0xff]
        %v510 = vld [vmem:[#allocation2 + $0xa9] sm:$0xff]
        %v511 = vld [vmem:[#allocation2 + $0xb1] sm:$0xff]
        %v512 = vld [vmem:[#allocation2 + $0xc1] sm:$0xff]
        %v513 = vld [vmem:[#allocation2 + $0xc9] sm:$0xff]
        %v514 = vld [vmem:[#allocation2 + $0xd9] sm:$0xff]
        %v515 = vld [vmem:[#allocation2 + $0xe1] sm:$0xff]
        %v516 = vld [vmem:[#allocation2 + $0xf1] sm:$0xff]
        %v517 = vld [vmem:[#allocation2 + $0xf9] sm:$0xff]
        %v518 = vld [vmem:[#allocation2 + $0x109] sm:$0xff]
        %v519 = vld [vmem:[#allocation2 + $0x111] sm:$0xff]
        %v520 = vld [vmem:[#allocation2 + $0x121] sm:$0xff]
        %v521 = vld [vmem:[#allocation2 + $0x129] sm:$0xff]
        %v522 = vld [vmem:[#allocation2 + $0x139] sm:$0xff]
        %v523 = vld [vmem:[#allocation2 + $0x141] sm:$0xff]
        %v524 = vld [vmem:[#allocation2 + $0x151] sm:$0xff]
        %v525 = vld [vmem:[#allocation2 + $0x159] sm:$0xff]
        %v526 = vld [vmem:[#allocation2 + $0x169] sm:$0xff]
        %v527 = vld [vmem:[#allocation2 + $0x171] sm:$0xff]
        %v528 = vld [vmem:[#allocation2 + $0x181] sm:$0xff]
        %v529 = vld [vmem:[#allocation2 + $0x189] sm:$0xff]
        %v530 = vld [vmem:[#allocation2 + $0x199] sm:$0xff]
        %v531 = vld [vmem:[#allocation2 + $0x1a1] sm:$0xff]
        %532 = vst.msk [vmem:[#allocation4] sm:$0xff] %vm346, %v496
        %533 = vst.msk [vmem:[#allocation4 + $0x8] sm:$0xff] %vm346, %v497
        %534 = vst.msk [vmem:[#allocation4 + $0x10] sm:$0xff] %vm346, %v498
        %535 = vst.msk [vmem:[#allocation4 + $0x18] sm:$0xff] %vm346, %v499
        %536 = vst.msk [vmem:[#allocation4 + $0x20] sm:$0xff] %vm346, %v500
        %537 = vst.msk [vmem:[#allocation4 + $0x28] sm:$0xff] %vm346, %v501
        %538 = vst.msk [vmem:[#allocation4 + $0x30] sm:$0xff] %vm346, %v502
        %539 = vst.msk [vmem:[#allocation4 + $0x38] sm:$0xff] %vm346, %v503
        %540 = vst.msk [vmem:[#allocation4 + $0x40] sm:$0xff] %vm346, %v504
        %541 = vst.msk [vmem:[#allocation4 + $0x48] sm:$0xff] %vm346, %v505
        %542 = vst.msk [vmem:[#allocation4 + $0x50] sm:$0xff] %vm346, %v506
        %543 = vst.msk [vmem:[#allocation4 + $0x58] sm:$0xff] %vm346, %v507
        %544 = vst.msk [vmem:[#allocation4 + $0x60] sm:$0xff] %vm346, %v508
        %545 = vst.msk [vmem:[#allocation4 + $0x68] sm:$0xff] %vm346, %v509
        %546 = vst.msk [vmem:[#allocation4 + $0x70] sm:$0xff] %vm346, %v510
        %547 = vst.msk [vmem:[#allocation4 + $0x78] sm:$0xff] %vm346, %v511
        %548 = vst.msk [vmem:[#allocation4 + $0x80] sm:$0xff] %vm346, %v512
        %549 = vst.msk [vmem:[#allocation4 + $0x88] sm:$0xff] %vm346, %v513
        %550 = vst.msk [vmem:[#allocation4 + $0x90] sm:$0xff] %vm346, %v514
        %551 = vst.msk [vmem:[#allocation4 + $0x98] sm:$0xff] %vm346, %v515
        %552 = vst.msk [vmem:[#allocation4 + $0xa0] sm:$0xff] %vm346, %v516
        %553 = vst.msk [vmem:[#allocation4 + $0xa8] sm:$0xff] %vm346, %v517
        %554 = vst.msk [vmem:[#allocation4 + $0xb0] sm:$0xff] %vm346, %v518
        %555 = vst.msk [vmem:[#allocation4 + $0xb8] sm:$0xff] %vm346, %v519
        %556 = vst.msk [vmem:[#allocation4 + $0xc0] sm:$0xff] %vm346, %v520
        %557 = vst.msk [vmem:[#allocation4 + $0xc8] sm:$0xff] %vm346, %v521
        %558 = vst.msk [vmem:[#allocation4 + $0xd0] sm:$0xff] %vm346, %v522
        %559 = vst.msk [vmem:[#allocation4 + $0xd8] sm:$0xff] %vm346, %v523
        %560 = vst.msk [vmem:[#allocation4 + $0xe0] sm:$0xff] %vm346, %v524
        %561 = vst.msk [vmem:[#allocation4 + $0xe8] sm:$0xff] %vm346, %v525
        %562 = vst.msk [vmem:[#allocation4 + $0xf0] sm:$0xff] %vm346, %v526
        %563 = vst.msk [vmem:[#allocation4 + $0xf8] sm:$0xff] %vm346, %v527
        %564 = vst.msk [vmem:[#allocation4 + $0x100] sm:$0xff] %vm346, %v528
        %565 = vst.msk [vmem:[#allocation4 + $0x108] sm:$0xff] %vm346, %v529
        %566 = vst.msk [vmem:[#allocation4 + $0x110] sm:$0xff] %vm346, %v530
        %567 = vst.msk [vmem:[#allocation4 + $0x118] sm:$0xff] %vm346, %v531
        %v568 = vld [vmem:[#allocation2 + $0x2] sm:$0xff]
        %v569 = vld [vmem:[#allocation2 + $0xa] sm:$0xff]
        %v570 = vld [vmem:[#allocation2 + $0x1a] sm:$0xff]
        %v571 = vld [vmem:[#allocation2 + $0x22] sm:$0xff]
        %v572 = vld [vmem:[#allocation2 + $0x32] sm:$0xff]
        %v573 = vld [vmem:[#allocation2 + $0x3a] sm:$0xff]
        %v574 = vld [vmem:[#allocation2 + $0x4a] sm:$0xff]
        %v575 = vld [vmem:[#allocation2 + $0x52] sm:$0xff]
        %v576 = vld [vmem:[#allocation2 + $0x62] sm:$0xff]
        %v577 = vld [vmem:[#allocation2 + $0x6a] sm:$0xff]
        %v578 = vld [vmem:[#allocation2 + $0x7a] sm:$0xff]
        %v579 = vld [vmem:[#allocation2 + $0x82] sm:$0xff]
        %v580 = vld [vmem:[#allocation2 + $0x92] sm:$0xff]
        %v581 = vld [vmem:[#allocation2 + $0x9a] sm:$0xff]
        %v582 = vld [vmem:[#allocation2 + $0xaa] sm:$0xff]
        %v583 = vld [vmem:[#allocation2 + $0xb2] sm:$0xff]
        %v584 = vld [vmem:[#allocation2 + $0xc2] sm:$0xff]
        %v585 = vld [vmem:[#allocation2 + $0xca] sm:$0xff]
        %v586 = vld [vmem:[#allocation2 + $0xda] sm:$0xff]
        %v587 = vld [vmem:[#allocation2 + $0xe2] sm:$0xff]
        %v588 = vld [vmem:[#allocation2 + $0xf2] sm:$0xff]
        %v589 = vld [vmem:[#allocation2 + $0xfa] sm:$0xff]
        %v590 = vld [vmem:[#allocation2 + $0x10a] sm:$0xff]
        %v591 = vld [vmem:[#allocation2 + $0x112] sm:$0xff]
        %v592 = vld [vmem:[#allocation2 + $0x122] sm:$0xff]
        %v593 = vld [vmem:[#allocation2 + $0x12a] sm:$0xff]
        %v594 = vld [vmem:[#allocation2 + $0x13a] sm:$0xff]
        %v595 = vld [vmem:[#allocation2 + $0x142] sm:$0xff]
        %v596 = vld [vmem:[#allocation2 + $0x152] sm:$0xff]
        %v597 = vld [vmem:[#allocation2 + $0x15a] sm:$0xff]
        %v598 = vld [vmem:[#allocation2 + $0x16a] sm:$0xff]
        %v599 = vld [vmem:[#allocation2 + $0x172] sm:$0xff]
        %v600 = vld [vmem:[#allocation2 + $0x182] sm:$0xff]
        %v601 = vld [vmem:[#allocation2 + $0x18a] sm:$0xff]
        %v602 = vld [vmem:[#allocation2 + $0x19a] sm:$0xff]
        %v603 = vld [vmem:[#allocation2 + $0x1a2] sm:$0xff]
        %604 = vst.msk [vmem:[#allocation5] sm:$0xff] %vm346, %v568
        %605 = vst.msk [vmem:[#allocation5 + $0x8] sm:$0xff] %vm346, %v569
        %606 = vst.msk [vmem:[#allocation5 + $0x10] sm:$0xff] %vm346, %v570
        %607 = vst.msk [vmem:[#allocation5 + $0x18] sm:$0xff] %vm346, %v571
        %608 = vst.msk [vmem:[#allocation5 + $0x20] sm:$0xff] %vm346, %v572
        %609 = vst.msk [vmem:[#allocation5 + $0x28] sm:$0xff] %vm346, %v573
        %610 = vst.msk [vmem:[#allocation5 + $0x30] sm:$0xff] %vm346, %v574
        %611 = vst.msk [vmem:[#allocation5 + $0x38] sm:$0xff] %vm346, %v575
        %612 = vst.msk [vmem:[#allocation5 + $0x40] sm:$0xff] %vm346, %v576
        %613 = vst.msk [vmem:[#allocation5 + $0x48] sm:$0xff] %vm346, %v577
        %614 = vst.msk [vmem:[#allocation5 + $0x50] sm:$0xff] %vm346, %v578
        %615 = vst.msk [vmem:[#allocation5 + $0x58] sm:$0xff] %vm346, %v579
        %616 = vst.msk [vmem:[#allocation5 + $0x60] sm:$0xff] %vm346, %v580
        %617 = vst.msk [vmem:[#allocation5 + $0x68] sm:$0xff] %vm346, %v581
        %618 = vst.msk [vmem:[#allocation5 + $0x70] sm:$0xff] %vm346, %v582
        %619 = vst.msk [vmem:[#allocation5 + $0x78] sm:$0xff] %vm346, %v583
        %620 = vst.msk [vmem:[#allocation5 + $0x80] sm:$0xff] %vm346, %v584
        %621 = vst.msk [vmem:[#allocation5 + $0x88] sm:$0xff] %vm346, %v585
        %622 = vst.msk [vmem:[#allocation5 + $0x90] sm:$0xff] %vm346, %v586
        %623 = vst.msk [vmem:[#allocation5 + $0x98] sm:$0xff] %vm346, %v587
        %624 = vst.msk [vmem:[#allocation5 + $0xa0] sm:$0xff] %vm346, %v588
        %625 = vst.msk [vmem:[#allocation5 + $0xa8] sm:$0xff] %vm346, %v589
        %626 = vst.msk [vmem:[#allocation5 + $0xb0] sm:$0xff] %vm346, %v590
        %627 = vst.msk [vmem:[#allocation5 + $0xb8] sm:$0xff] %vm346, %v591
        %628 = vst.msk [vmem:[#allocation5 + $0xc0] sm:$0xff] %vm346, %v592
        %629 = vst.msk [vmem:[#allocation5 + $0xc8] sm:$0xff] %vm346, %v593
        %630 = vst.msk [vmem:[#allocation5 + $0xd0] sm:$0xff] %vm346, %v594
        %631 = vst.msk [vmem:[#allocation5 + $0xd8] sm:$0xff] %vm346, %v595
        %632 = vst.msk [vmem:[#allocation5 + $0xe0] sm:$0xff] %vm346, %v596
        %633 = vst.msk [vmem:[#allocation5 + $0xe8] sm:$0xff] %vm346, %v597
        %634 = vst.msk [vmem:[#allocation5 + $0xf0] sm:$0xff] %vm346, %v598
        %635 = vst.msk [vmem:[#allocation5 + $0xf8] sm:$0xff] %vm346, %v599
        %636 = vst.msk [vmem:[#allocation5 + $0x100] sm:$0xff] %vm346, %v600
        %637 = vst.msk [vmem:[#allocation5 + $0x108] sm:$0xff] %vm346, %v601
        %638 = vst.msk [vmem:[#allocation5 + $0x110] sm:$0xff] %vm346, %v602
        %639 = vst.msk [vmem:[#allocation5 + $0x118] sm:$0xff] %vm346, %v603
        %v640 = vld [vmem:[%s1] sm:$0x7]
        %v641 = vld [vmem:[%s1 + $0x4] sm:$0x7]
        %v642 = vld [vmem:[%s1 + $0x8] sm:$0x7]
        %v643 = vld [vmem:[#allocation3] sm:$0xff]
        %v644 = vld [vmem:[#allocation3 + $0x8] sm:$0xff]
        %v645 = vld [vmem:[#allocation3 + $0x10] sm:$0xff]
        %v646 = vld [vmem:[#allocation3 + $0x18] sm:$0xff]
        %v647 = vld [vmem:[#allocation3 + $0x20] sm:$0xff]
        %v648 = vld [vmem:[#allocation3 + $0x28] sm:$0xff]
        %v649 = vld [vmem:[#allocation3 + $0x30] sm:$0xff]
        %v650 = vld [vmem:[#allocation3 + $0x38] sm:$0xff]
        %v651 = vld [vmem:[#allocation3 + $0x40] sm:$0xff]
        %v652 = vld [vmem:[#allocation3 + $0x48] sm:$0xff]
        %v653 = vld [vmem:[#allocation3 + $0x50] sm:$0xff]
        %v654 = vld [vmem:[#allocation3 + $0x58] sm:$0xff]
        %v655 = vld [vmem:[#allocation3 + $0x60] sm:$0xff]
        %v656 = vld [vmem:[#allocation3 + $0x68] sm:$0xff]
        %v657 = vld [vmem:[#allocation3 + $0x70] sm:$0xff]
        %v658 = vld [vmem:[#allocation3 + $0x78] sm:$0xff]
        %v659 = vld [vmem:[#allocation3 + $0x80] sm:$0xff]
        %v660 = vld [vmem:[#allocation3 + $0x88] sm:$0xff]
        %v661 = vld [vmem:[#allocation3 + $0x90] sm:$0xff]
        %v662 = vld [vmem:[#allocation3 + $0x98] sm:$0xff]
        %v663 = vld [vmem:[#allocation3 + $0xa0] sm:$0xff]
        %v664 = vld [vmem:[#allocation3 + $0xa8] sm:$0xff]
        %v665 = vld [vmem:[#allocation3 + $0xb0] sm:$0xff]
        %v666 = vld [vmem:[#allocation3 + $0xb8] sm:$0xff]
        %v667 = vld [vmem:[#allocation3 + $0xc0] sm:$0xff]
        %v668 = vld [vmem:[#allocation3 + $0xc8] sm:$0xff]
        %v669 = vld [vmem:[#allocation3 + $0xd0] sm:$0xff]
        %v670 = vld [vmem:[#allocation3 + $0xd8] sm:$0xff]
        %v671 = vld [vmem:[#allocation3 + $0xe0] sm:$0xff]
        %v672 = vld [vmem:[#allocation3 + $0xe8] sm:$0xff]
        %v673 = vld [vmem:[#allocation3 + $0xf0] sm:$0xff]
        %v674 = vld [vmem:[#allocation3 + $0xf8] sm:$0xff]
        %v675 = vlaneseq
        %v676 = vshrl.u32 %v675, 7
        %v677 = vsub.s32 0, %v676
        %v678 = vrot.slane %v640, %v677
        %v679 = vmul.f32 %v643, %v678
        %v680 = vmul.f32 %v644, %v678
        %v681 = vmul.f32 %v645, %v678
        %v682 = vmul.f32 %v646, %v678
        %v683 = vmul.f32 %v647, %v678
        %v684 = vmul.f32 %v648, %v678
        %v685 = vmul.f32 %v649, %v678
        %v686 = vmul.f32 %v650, %v678
        %v687 = vmul.f32 %v651, %v678
        %v688 = vmul.f32 %v652, %v678
        %v689 = vmul.f32 %v653, %v678
        %v690 = vmul.f32 %v654, %v678
        %v691 = vmul.f32 %v655, %v678
        %v692 = vmul.f32 %v656, %v678
        %v693 = vmul.f32 %v657, %v678
        %v694 = vmul.f32 %v658, %v678
        %v695 = vmul.f32 %v659, %v678
        %v696 = vmul.f32 %v660, %v678
        %v697 = vmul.f32 %v661, %v678
        %v698 = vmul.f32 %v662, %v678
        %v699 = vmul.f32 %v663, %v678
        %v700 = vmul.f32 %v664, %v678
        %v701 = vmul.f32 %v665, %v678
        %v702 = vmul.f32 %v666, %v678
        %v703 = vmul.f32 %v667, %v678
        %v704 = vmul.f32 %v668, %v678
        %v705 = vmul.f32 %v669, %v678
        %v706 = vmul.f32 %v670, %v678
        %v707 = vmul.f32 %v671, %v678
        %v708 = vmul.f32 %v672, %v678
        %v709 = vmul.f32 %v673, %v678
        %v710 = vmul.f32 %v674, %v678
        %v711 = vld [vmem:[#allocation4] sm:$0xff]
        %v712 = vld [vmem:[#allocation4 + $0x8] sm:$0xff]
        %v713 = vld [vmem:[#allocation4 + $0x10] sm:$0xff]
        %v714 = vld [vmem:[#allocation4 + $0x18] sm:$0xff]
        %v715 = vld [vmem:[#allocation4 + $0x20] sm:$0xff]
        %v716 = vld [vmem:[#allocation4 + $0x28] sm:$0xff]
        %v717 = vld [vmem:[#allocation4 + $0x30] sm:$0xff]
        %v718 = vld [vmem:[#allocation4 + $0x38] sm:$0xff]
        %v719 = vld [vmem:[#allocation4 + $0x40] sm:$0xff]
        %v720 = vld [vmem:[#allocation4 + $0x48] sm:$0xff]
        %v721 = vld [vmem:[#allocation4 + $0x50] sm:$0xff]
        %v722 = vld [vmem:[#allocation4 + $0x58] sm:$0xff]
        %v723 = vld [vmem:[#allocation4 + $0x60] sm:$0xff]
        %v724 = vld [vmem:[#allocation4 + $0x68] sm:$0xff]
        %v725 = vld [vmem:[#allocation4 + $0x70] sm:$0xff]
        %v726 = vld [vmem:[#allocation4 + $0x78] sm:$0xff]
        %v727 = vld [vmem:[#allocation4 + $0x80] sm:$0xff]
        %v728 = vld [vmem:[#allocation4 + $0x88] sm:$0xff]
        %v729 = vld [vmem:[#allocation4 + $0x90] sm:$0xff]
        %v730 = vld [vmem:[#allocation4 + $0x98] sm:$0xff]
        %v731 = vld [vmem:[#allocation4 + $0xa0] sm:$0xff]
        %v732 = vld [vmem:[#allocation4 + $0xa8] sm:$0xff]
        %v733 = vld [vmem:[#allocation4 + $0xb0] sm:$0xff]
        %v734 = vld [vmem:[#allocation4 + $0xb8] sm:$0xff]
        %v735 = vld [vmem:[#allocation4 + $0xc0] sm:$0xff]
        %v736 = vld [vmem:[#allocation4 + $0xc8] sm:$0xff]
        %v737 = vld [vmem:[#allocation4 + $0xd0] sm:$0xff]
        %v738 = vld [vmem:[#allocation4 + $0xd8] sm:$0xff]
        %v739 = vld [vmem:[#allocation4 + $0xe0] sm:$0xff]
        %v740 = vld [vmem:[#allocation4 + $0xe8] sm:$0xff]
        %v741 = vld [vmem:[#allocation4 + $0xf0] sm:$0xff]
        %v742 = vld [vmem:[#allocation4 + $0xf8] sm:$0xff]
        %v743 = vlaneseq
        %v744 = vshrl.u32 %v743, 7
        %v745 = vsub.s32 1, %v744
        %v746 = vrot.slane %v640, %v745
        %v747 = vmul.f32 %v711, %v746
        %v748 = vmul.f32 %v712, %v746
        %v749 = vmul.f32 %v713, %v746
        %v750 = vmul.f32 %v714, %v746
        %v751 = vmul.f32 %v715, %v746
        %v752 = vmul.f32 %v716, %v746
        %v753 = vmul.f32 %v717, %v746
        %v754 = vmul.f32 %v718, %v746
        %v755 = vmul.f32 %v719, %v746
        %v756 = vmul.f32 %v720, %v746
        %v757 = vmul.f32 %v721, %v746
        %v758 = vmul.f32 %v722, %v746
        %v759 = vmul.f32 %v723, %v746
        %v760 = vmul.f32 %v724, %v746
        %v761 = vmul.f32 %v725, %v746
        %v762 = vmul.f32 %v726, %v746
        %v763 = vmul.f32 %v727, %v746
        %v764 = vmul.f32 %v728, %v746
        %v765 = vmul.f32 %v729, %v746
        %v766 = vmul.f32 %v730, %v746
        %v767 = vmul.f32 %v731, %v746
        %v768 = vmul.f32 %v732, %v746
        %v769 = vmul.f32 %v733, %v746
        %v770 = vmul.f32 %v734, %v746
        %v771 = vmul.f32 %v735, %v746
        %v772 = vmul.f32 %v736, %v746
        %v773 = vmul.f32 %v737, %v746
        %v774 = vmul.f32 %v738, %v746
        %v775 = vmul.f32 %v739, %v746
        %v776 = vmul.f32 %v740, %v746
        %v777 = vmul.f32 %v741, %v746
        %v778 = vmul.f32 %v742, %v746
        %v779 = vadd.f32 %v679, %v747
        %v780 = vadd.f32 %v680, %v748
        %v781 = vadd.f32 %v681, %v749
        %v782 = vadd.f32 %v682, %v750
        %v783 = vadd.f32 %v683, %v751
        %v784 = vadd.f32 %v684, %v752
        %v785 = vadd.f32 %v685, %v753
        %v786 = vadd.f32 %v686, %v754
        %v787 = vadd.f32 %v687, %v755
        %v788 = vadd.f32 %v688, %v756
        %v789 = vadd.f32 %v689, %v757
        %v790 = vadd.f32 %v690, %v758
        %v791 = vadd.f32 %v691, %v759
        %v792 = vadd.f32 %v692, %v760
        %v793 = vadd.f32 %v693, %v761
        %v794 = vadd.f32 %v694, %v762
        %v795 = vadd.f32 %v695, %v763
        %v796 = vadd.f32 %v696, %v764
        %v797 = vadd.f32 %v697, %v765
        %v798 = vadd.f32 %v698, %v766
        %v799 = vadd.f32 %v699, %v767
        %v800 = vadd.f32 %v700, %v768
        %v801 = vadd.f32 %v701, %v769
        %v802 = vadd.f32 %v702, %v770
        %v803 = vadd.f32 %v703, %v771
        %v804 = vadd.f32 %v704, %v772
        %v805 = vadd.f32 %v705, %v773
        %v806 = vadd.f32 %v706, %v774
        %v807 = vadd.f32 %v707, %v775
        %v808 = vadd.f32 %v708, %v776
        %v809 = vadd.f32 %v709, %v777
        %v810 = vadd.f32 %v710, %v778
        %v811 = vld [vmem:[#allocation5] sm:$0xff]
        %v812 = vld [vmem:[#allocation5 + $0x8] sm:$0xff]
        %v813 = vld [vmem:[#allocation5 + $0x10] sm:$0xff]
        %v814 = vld [vmem:[#allocation5 + $0x18] sm:$0xff]
        %v815 = vld [vmem:[#allocation5 + $0x20] sm:$0xff]
        %v816 = vld [vmem:[#allocation5 + $0x28] sm:$0xff]
        %v817 = vld [vmem:[#allocation5 + $0x30] sm:$0xff]
        %v818 = vld [vmem:[#allocation5 + $0x38] sm:$0xff]
        %v819 = vld [vmem:[#allocation5 + $0x40] sm:$0xff]
        %v820 = vld [vmem:[#allocation5 + $0x48] sm:$0xff]
        %v821 = vld [vmem:[#allocation5 + $0x50] sm:$0xff]
        %v822 = vld [vmem:[#allocation5 + $0x58] sm:$0xff]
        %v823 = vld [vmem:[#allocation5 + $0x60] sm:$0xff]
        %v824 = vld [vmem:[#allocation5 + $0x68] sm:$0xff]
        %v825 = vld [vmem:[#allocation5 + $0x70] sm:$0xff]
        %v826 = vld [vmem:[#allocation5 + $0x78] sm:$0xff]
        %v827 = vld [vmem:[#allocation5 + $0x80] sm:$0xff]
        %v828 = vld [vmem:[#allocation5 + $0x88] sm:$0xff]
        %v829 = vld [vmem:[#allocation5 + $0x90] sm:$0xff]
        %v830 = vld [vmem:[#allocation5 + $0x98] sm:$0xff]
        %v831 = vld [vmem:[#allocation5 + $0xa0] sm:$0xff]
        %v832 = vld [vmem:[#allocation5 + $0xa8] sm:$0xff]
        %v833 = vld [vmem:[#allocation5 + $0xb0] sm:$0xff]
        %v834 = vld [vmem:[#allocation5 + $0xb8] sm:$0xff]
        %v835 = vld [vmem:[#allocation5 + $0xc0] sm:$0xff]
        %v836 = vld [vmem:[#allocation5 + $0xc8] sm:$0xff]
        %v837 = vld [vmem:[#allocation5 + $0xd0] sm:$0xff]
        %v838 = vld [vmem:[#allocation5 + $0xd8] sm:$0xff]
        %v839 = vld [vmem:[#allocation5 + $0xe0] sm:$0xff]
        %v840 = vld [vmem:[#allocation5 + $0xe8] sm:$0xff]
        %v841 = vld [vmem:[#allocation5 + $0xf0] sm:$0xff]
        %v842 = vld [vmem:[#allocation5 + $0xf8] sm:$0xff]
        %v843 = vlaneseq
        %v844 = vshrl.u32 %v843, 7
        %v845 = vsub.s32 2, %v844
        %v846 = vrot.slane %v640, %v845
        %v847 = vmul.f32 %v811, %v846
        %v848 = vmul.f32 %v812, %v846
        %v849 = vmul.f32 %v813, %v846
        %v850 = vmul.f32 %v814, %v846
        %v851 = vmul.f32 %v815, %v846
        %v852 = vmul.f32 %v816, %v846
        %v853 = vmul.f32 %v817, %v846
        %v854 = vmul.f32 %v818, %v846
        %v855 = vmul.f32 %v819, %v846
        %v856 = vmul.f32 %v820, %v846
        %v857 = vmul.f32 %v821, %v846
        %v858 = vmul.f32 %v822, %v846
        %v859 = vmul.f32 %v823, %v846
        %v860 = vmul.f32 %v824, %v846
        %v861 = vmul.f32 %v825, %v846
        %v862 = vmul.f32 %v826, %v846
        %v863 = vmul.f32 %v827, %v846
        %v864 = vmul.f32 %v828, %v846
        %v865 = vmul.f32 %v829, %v846
        %v866 = vmul.f32 %v830, %v846
        %v867 = vmul.f32 %v831, %v846
        %v868 = vmul.f32 %v832, %v846
        %v869 = vmul.f32 %v833, %v846
        %v870 = vmul.f32 %v834, %v846
        %v871 = vmul.f32 %v835, %v846
        %v872 = vmul.f32 %v836, %v846
        %v873 = vmul.f32 %v837, %v846
        %v874 = vmul.f32 %v838, %v846
        %v875 = vmul.f32 %v839, %v846
        %v876 = vmul.f32 %v840, %v846
        %v877 = vmul.f32 %v841, %v846
        %v878 = vmul.f32 %v842, %v846
        %v879 = vadd.f32 %v779, %v847
        %v880 = vadd.f32 %v780, %v848
        %v881 = vadd.f32 %v781, %v849
        %v882 = vadd.f32 %v782, %v850
        %v883 = vadd.f32 %v783, %v851
        %v884 = vadd.f32 %v784, %v852
        %v885 = vadd.f32 %v785, %v853
        %v886 = vadd.f32 %v786, %v854
        %v887 = vadd.f32 %v787, %v855
        %v888 = vadd.f32 %v788, %v856
        %v889 = vadd.f32 %v789, %v857
        %v890 = vadd.f32 %v790, %v858
        %v891 = vadd.f32 %v791, %v859
        %v892 = vadd.f32 %v792, %v860
        %v893 = vadd.f32 %v793, %v861
        %v894 = vadd.f32 %v794, %v862
        %v895 = vadd.f32 %v795, %v863
        %v896 = vadd.f32 %v796, %v864
        %v897 = vadd.f32 %v797, %v865
        %v898 = vadd.f32 %v798, %v866
        %v899 = vadd.f32 %v799, %v867
        %v900 = vadd.f32 %v800, %v868
        %v901 = vadd.f32 %v801, %v869
        %v902 = vadd.f32 %v802, %v870
        %v903 = vadd.f32 %v803, %v871
        %v904 = vadd.f32 %v804, %v872
        %v905 = vadd.f32 %v805, %v873
        %v906 = vadd.f32 %v806, %v874
        %v907 = vadd.f32 %v807, %v875
        %v908 = vadd.f32 %v808, %v876
        %v909 = vadd.f32 %v809, %v877
        %v910 = vadd.f32 %v810, %v878
        %s911 = scalar_lea.vmem [#allocation3], 16
        %v912 = vld [vmem:[%s911] sm:$0xff]
        %v913 = vld [vmem:[%s911 + $0x8] sm:$0xff]
        %v914 = vld [vmem:[%s911 + $0x10] sm:$0xff]
        %v915 = vld [vmem:[%s911 + $0x18] sm:$0xff]
        %v916 = vld [vmem:[%s911 + $0x20] sm:$0xff]
        %v917 = vld [vmem:[%s911 + $0x28] sm:$0xff]
        %v918 = vld [vmem:[%s911 + $0x30] sm:$0xff]
        %v919 = vld [vmem:[%s911 + $0x38] sm:$0xff]
        %v920 = vld [vmem:[%s911 + $0x40] sm:$0xff]
        %v921 = vld [vmem:[%s911 + $0x48] sm:$0xff]
        %v922 = vld [vmem:[%s911 + $0x50] sm:$0xff]
        %v923 = vld [vmem:[%s911 + $0x58] sm:$0xff]
        %v924 = vld [vmem:[%s911 + $0x60] sm:$0xff]
        %v925 = vld [vmem:[%s911 + $0x68] sm:$0xff]
        %v926 = vld [vmem:[%s911 + $0x70] sm:$0xff]
        %v927 = vld [vmem:[%s911 + $0x78] sm:$0xff]
        %v928 = vld [vmem:[%s911 + $0x80] sm:$0xff]
        %v929 = vld [vmem:[%s911 + $0x88] sm:$0xff]
        %v930 = vld [vmem:[%s911 + $0x90] sm:$0xff]
        %v931 = vld [vmem:[%s911 + $0x98] sm:$0xff]
        %v932 = vld [vmem:[%s911 + $0xa0] sm:$0xff]
        %v933 = vld [vmem:[%s911 + $0xa8] sm:$0xff]
        %v934 = vld [vmem:[%s911 + $0xb0] sm:$0xff]
        %v935 = vld [vmem:[%s911 + $0xb8] sm:$0xff]
        %v936 = vld [vmem:[%s911 + $0xc0] sm:$0xff]
        %v937 = vld [vmem:[%s911 + $0xc8] sm:$0xff]
        %v938 = vld [vmem:[%s911 + $0xd0] sm:$0xff]
        %v939 = vld [vmem:[%s911 + $0xd8] sm:$0xff]
        %v940 = vld [vmem:[%s911 + $0xe0] sm:$0xff]
        %v941 = vld [vmem:[%s911 + $0xe8] sm:$0xff]
        %v942 = vld [vmem:[%s911 + $0xf0] sm:$0xff]
        %v943 = vld [vmem:[%s911 + $0xf8] sm:$0xff]
        %v944 = vlaneseq
        %v945 = vshrl.u32 %v944, 7
        %v946 = vsub.s32 0, %v945
        %v947 = vrot.slane %v641, %v946
        %v948 = vmul.f32 %v912, %v947
        %v949 = vmul.f32 %v913, %v947
        %v950 = vmul.f32 %v914, %v947
        %v951 = vmul.f32 %v915, %v947
        %v952 = vmul.f32 %v916, %v947
        %v953 = vmul.f32 %v917, %v947
        %v954 = vmul.f32 %v918, %v947
        %v955 = vmul.f32 %v919, %v947
        %v956 = vmul.f32 %v920, %v947
        %v957 = vmul.f32 %v921, %v947
        %v958 = vmul.f32 %v922, %v947
        %v959 = vmul.f32 %v923, %v947
        %v960 = vmul.f32 %v924, %v947
        %v961 = vmul.f32 %v925, %v947
        %v962 = vmul.f32 %v926, %v947
        %v963 = vmul.f32 %v927, %v947
        %v964 = vmul.f32 %v928, %v947
        %v965 = vmul.f32 %v929, %v947
        %v966 = vmul.f32 %v930, %v947
        %v967 = vmul.f32 %v931, %v947
        %v968 = vmul.f32 %v932, %v947
        %v969 = vmul.f32 %v933, %v947
        %v970 = vmul.f32 %v934, %v947
        %v971 = vmul.f32 %v935, %v947
        %v972 = vmul.f32 %v936, %v947
        %v973 = vmul.f32 %v937, %v947
        %v974 = vmul.f32 %v938, %v947
        %v975 = vmul.f32 %v939, %v947
        %v976 = vmul.f32 %v940, %v947
        %v977 = vmul.f32 %v941, %v947
        %v978 = vmul.f32 %v942, %v947
        %v979 = vmul.f32 %v943, %v947
        %v980 = vadd.f32 %v879, %v948
        %v981 = vadd.f32 %v880, %v949
        %v982 = vadd.f32 %v881, %v950
        %v983 = vadd.f32 %v882, %v951
        %v984 = vadd.f32 %v883, %v952
        %v985 = vadd.f32 %v884, %v953
        %v986 = vadd.f32 %v885, %v954
        %v987 = vadd.f32 %v886, %v955
        %v988 = vadd.f32 %v887, %v956
        %v989 = vadd.f32 %v888, %v957
        %v990 = vadd.f32 %v889, %v958
        %v991 = vadd.f32 %v890, %v959
        %v992 = vadd.f32 %v891, %v960
        %v993 = vadd.f32 %v892, %v961
        %v994 = vadd.f32 %v893, %v962
        %v995 = vadd.f32 %v894, %v963
        %v996 = vadd.f32 %v895, %v964
        %v997 = vadd.f32 %v896, %v965
        %v998 = vadd.f32 %v897, %v966
        %v999 = vadd.f32 %v898, %v967
        %v1000 = vadd.f32 %v899, %v968
        %v1001 = vadd.f32 %v900, %v969
        %v1002 = vadd.f32 %v901, %v970
        %v1003 = vadd.f32 %v902, %v971
        %v1004 = vadd.f32 %v903, %v972
        %v1005 = vadd.f32 %v904, %v973
        %v1006 = vadd.f32 %v905, %v974
        %v1007 = vadd.f32 %v906, %v975
        %v1008 = vadd.f32 %v907, %v976
        %v1009 = vadd.f32 %v908, %v977
        %v1010 = vadd.f32 %v909, %v978
        %v1011 = vadd.f32 %v910, %v979
        %s1012 = scalar_lea.vmem [#allocation4], 16
        %v1013 = vld [vmem:[%s1012] sm:$0xff]
        %v1014 = vld [vmem:[%s1012 + $0x8] sm:$0xff]
        %v1015 = vld [vmem:[%s1012 + $0x10] sm:$0xff]
        %v1016 = vld [vmem:[%s1012 + $0x18] sm:$0xff]
        %v1017 = vld [vmem:[%s1012 + $0x20] sm:$0xff]
        %v1018 = vld [vmem:[%s1012 + $0x28] sm:$0xff]
        %v1019 = vld [vmem:[%s1012 + $0x30] sm:$0xff]
        %v1020 = vld [vmem:[%s1012 + $0x38] sm:$0xff]
        %v1021 = vld [vmem:[%s1012 + $0x40] sm:$0xff]
        %v1022 = vld [vmem:[%s1012 + $0x48] sm:$0xff]
        %v1023 = vld [vmem:[%s1012 + $0x50] sm:$0xff]
        %v1024 = vld [vmem:[%s1012 + $0x58] sm:$0xff]
        %v1025 = vld [vmem:[%s1012 + $0x60] sm:$0xff]
        %v1026 = vld [vmem:[%s1012 + $0x68] sm:$0xff]
        %v1027 = vld [vmem:[%s1012 + $0x70] sm:$0xff]
        %v1028 = vld [vmem:[%s1012 + $0x78] sm:$0xff]
        %v1029 = vld [vmem:[%s1012 + $0x80] sm:$0xff]
        %v1030 = vld [vmem:[%s1012 + $0x88] sm:$0xff]
        %v1031 = vld [vmem:[%s1012 + $0x90] sm:$0xff]
        %v1032 = vld [vmem:[%s1012 + $0x98] sm:$0xff]
        %v1033 = vld [vmem:[%s1012 + $0xa0] sm:$0xff]
        %v1034 = vld [vmem:[%s1012 + $0xa8] sm:$0xff]
        %v1035 = vld [vmem:[%s1012 + $0xb0] sm:$0xff]
        %v1036 = vld [vmem:[%s1012 + $0xb8] sm:$0xff]
        %v1037 = vld [vmem:[%s1012 + $0xc0] sm:$0xff]
        %v1038 = vld [vmem:[%s1012 + $0xc8] sm:$0xff]
        %v1039 = vld [vmem:[%s1012 + $0xd0] sm:$0xff]
        %v1040 = vld [vmem:[%s1012 + $0xd8] sm:$0xff]
        %v1041 = vld [vmem:[%s1012 + $0xe0] sm:$0xff]
        %v1042 = vld [vmem:[%s1012 + $0xe8] sm:$0xff]
        %v1043 = vld [vmem:[%s1012 + $0xf0] sm:$0xff]
        %v1044 = vld [vmem:[%s1012 + $0xf8] sm:$0xff]
        %v1045 = vlaneseq
        %v1046 = vshrl.u32 %v1045, 7
        %v1047 = vsub.s32 1, %v1046
        %v1048 = vrot.slane %v641, %v1047
        %v1049 = vmul.f32 %v1013, %v1048
        %v1050 = vmul.f32 %v1014, %v1048
        %v1051 = vmul.f32 %v1015, %v1048
        %v1052 = vmul.f32 %v1016, %v1048
        %v1053 = vmul.f32 %v1017, %v1048
        %v1054 = vmul.f32 %v1018, %v1048
        %v1055 = vmul.f32 %v1019, %v1048
        %v1056 = vmul.f32 %v1020, %v1048
        %v1057 = vmul.f32 %v1021, %v1048
        %v1058 = vmul.f32 %v1022, %v1048
        %v1059 = vmul.f32 %v1023, %v1048
        %v1060 = vmul.f32 %v1024, %v1048
        %v1061 = vmul.f32 %v1025, %v1048
        %v1062 = vmul.f32 %v1026, %v1048
        %v1063 = vmul.f32 %v1027, %v1048
        %v1064 = vmul.f32 %v1028, %v1048
        %v1065 = vmul.f32 %v1029, %v1048
        %v1066 = vmul.f32 %v1030, %v1048
        %v1067 = vmul.f32 %v1031, %v1048
        %v1068 = vmul.f32 %v1032, %v1048
        %v1069 = vmul.f32 %v1033, %v1048
        %v1070 = vmul.f32 %v1034, %v1048
        %v1071 = vmul.f32 %v1035, %v1048
        %v1072 = vmul.f32 %v1036, %v1048
        %v1073 = vmul.f32 %v1037, %v1048
        %v1074 = vmul.f32 %v1038, %v1048
        %v1075 = vmul.f32 %v1039, %v1048
        %v1076 = vmul.f32 %v1040, %v1048
        %v1077 = vmul.f32 %v1041, %v1048
        %v1078 = vmul.f32 %v1042, %v1048
        %v1079 = vmul.f32 %v1043, %v1048
        %v1080 = vmul.f32 %v1044, %v1048
        %v1081 = vadd.f32 %v980, %v1049
        %v1082 = vadd.f32 %v981, %v1050
        %v1083 = vadd.f32 %v982, %v1051
        %v1084 = vadd.f32 %v983, %v1052
        %v1085 = vadd.f32 %v984, %v1053
        %v1086 = vadd.f32 %v985, %v1054
        %v1087 = vadd.f32 %v986, %v1055
        %v1088 = vadd.f32 %v987, %v1056
        %v1089 = vadd.f32 %v988, %v1057
        %v1090 = vadd.f32 %v989, %v1058
        %v1091 = vadd.f32 %v990, %v1059
        %v1092 = vadd.f32 %v991, %v1060
        %v1093 = vadd.f32 %v992, %v1061
        %v1094 = vadd.f32 %v993, %v1062
        %v1095 = vadd.f32 %v994, %v1063
        %v1096 = vadd.f32 %v995, %v1064
        %v1097 = vadd.f32 %v996, %v1065
        %v1098 = vadd.f32 %v997, %v1066
        %v1099 = vadd.f32 %v998, %v1067
        %v1100 = vadd.f32 %v999, %v1068
        %v1101 = vadd.f32 %v1000, %v1069
        %v1102 = vadd.f32 %v1001, %v1070
        %v1103 = vadd.f32 %v1002, %v1071
        %v1104 = vadd.f32 %v1003, %v1072
        %v1105 = vadd.f32 %v1004, %v1073
        %v1106 = vadd.f32 %v1005, %v1074
        %v1107 = vadd.f32 %v1006, %v1075
        %v1108 = vadd.f32 %v1007, %v1076
        %v1109 = vadd.f32 %v1008, %v1077
        %v1110 = vadd.f32 %v1009, %v1078
        %v1111 = vadd.f32 %v1010, %v1079
        %v1112 = vadd.f32 %v1011, %v1080
        %s1113 = scalar_lea.vmem [#allocation5], 16
        %v1114 = vld [vmem:[%s1113] sm:$0xff]
        %v1115 = vld [vmem:[%s1113 + $0x8] sm:$0xff]
        %v1116 = vld [vmem:[%s1113 + $0x10] sm:$0xff]
        %v1117 = vld [vmem:[%s1113 + $0x18] sm:$0xff]
        %v1118 = vld [vmem:[%s1113 + $0x20] sm:$0xff]
        %v1119 = vld [vmem:[%s1113 + $0x28] sm:$0xff]
        %v1120 = vld [vmem:[%s1113 + $0x30] sm:$0xff]
        %v1121 = vld [vmem:[%s1113 + $0x38] sm:$0xff]
        %v1122 = vld [vmem:[%s1113 + $0x40] sm:$0xff]
        %v1123 = vld [vmem:[%s1113 + $0x48] sm:$0xff]
        %v1124 = vld [vmem:[%s1113 + $0x50] sm:$0xff]
        %v1125 = vld [vmem:[%s1113 + $0x58] sm:$0xff]
        %v1126 = vld [vmem:[%s1113 + $0x60] sm:$0xff]
        %v1127 = vld [vmem:[%s1113 + $0x68] sm:$0xff]
        %v1128 = vld [vmem:[%s1113 + $0x70] sm:$0xff]
        %v1129 = vld [vmem:[%s1113 + $0x78] sm:$0xff]
        %v1130 = vld [vmem:[%s1113 + $0x80] sm:$0xff]
        %v1131 = vld [vmem:[%s1113 + $0x88] sm:$0xff]
        %v1132 = vld [vmem:[%s1113 + $0x90] sm:$0xff]
        %v1133 = vld [vmem:[%s1113 + $0x98] sm:$0xff]
        %v1134 = vld [vmem:[%s1113 + $0xa0] sm:$0xff]
        %v1135 = vld [vmem:[%s1113 + $0xa8] sm:$0xff]
        %v1136 = vld [vmem:[%s1113 + $0xb0] sm:$0xff]
        %v1137 = vld [vmem:[%s1113 + $0xb8] sm:$0xff]
        %v1138 = vld [vmem:[%s1113 + $0xc0] sm:$0xff]
        %v1139 = vld [vmem:[%s1113 + $0xc8] sm:$0xff]
        %v1140 = vld [vmem:[%s1113 + $0xd0] sm:$0xff]
        %v1141 = vld [vmem:[%s1113 + $0xd8] sm:$0xff]
        %v1142 = vld [vmem:[%s1113 + $0xe0] sm:$0xff]
        %v1143 = vld [vmem:[%s1113 + $0xe8] sm:$0xff]
        %v1144 = vld [vmem:[%s1113 + $0xf0] sm:$0xff]
        %v1145 = vld [vmem:[%s1113 + $0xf8] sm:$0xff]
        %v1146 = vlaneseq
        %v1147 = vshrl.u32 %v1146, 7
        %v1148 = vsub.s32 2, %v1147
        %v1149 = vrot.slane %v641, %v1148
        %v1150 = vmul.f32 %v1114, %v1149
        %v1151 = vmul.f32 %v1115, %v1149
        %v1152 = vmul.f32 %v1116, %v1149
        %v1153 = vmul.f32 %v1117, %v1149
        %v1154 = vmul.f32 %v1118, %v1149
        %v1155 = vmul.f32 %v1119, %v1149
        %v1156 = vmul.f32 %v1120, %v1149
        %v1157 = vmul.f32 %v1121, %v1149
        %v1158 = vmul.f32 %v1122, %v1149
        %v1159 = vmul.f32 %v1123, %v1149
        %v1160 = vmul.f32 %v1124, %v1149
        %v1161 = vmul.f32 %v1125, %v1149
        %v1162 = vmul.f32 %v1126, %v1149
        %v1163 = vmul.f32 %v1127, %v1149
        %v1164 = vmul.f32 %v1128, %v1149
        %v1165 = vmul.f32 %v1129, %v1149
        %v1166 = vmul.f32 %v1130, %v1149
        %v1167 = vmul.f32 %v1131, %v1149
        %v1168 = vmul.f32 %v1132, %v1149
        %v1169 = vmul.f32 %v1133, %v1149
        %v1170 = vmul.f32 %v1134, %v1149
        %v1171 = vmul.f32 %v1135, %v1149
        %v1172 = vmul.f32 %v1136, %v1149
        %v1173 = vmul.f32 %v1137, %v1149
        %v1174 = vmul.f32 %v1138, %v1149
        %v1175 = vmul.f32 %v1139, %v1149
        %v1176 = vmul.f32 %v1140, %v1149
        %v1177 = vmul.f32 %v1141, %v1149
        %v1178 = vmul.f32 %v1142, %v1149
        %v1179 = vmul.f32 %v1143, %v1149
        %v1180 = vmul.f32 %v1144, %v1149
        %v1181 = vmul.f32 %v1145, %v1149
        %v1182 = vadd.f32 %v1081, %v1150
        %v1183 = vadd.f32 %v1082, %v1151
        %v1184 = vadd.f32 %v1083, %v1152
        %v1185 = vadd.f32 %v1084, %v1153
        %v1186 = vadd.f32 %v1085, %v1154
        %v1187 = vadd.f32 %v1086, %v1155
        %v1188 = vadd.f32 %v1087, %v1156
        %v1189 = vadd.f32 %v1088, %v1157
        %v1190 = vadd.f32 %v1089, %v1158
        %v1191 = vadd.f32 %v1090, %v1159
        %v1192 = vadd.f32 %v1091, %v1160
        %v1193 = vadd.f32 %v1092, %v1161
        %v1194 = vadd.f32 %v1093, %v1162
        %v1195 = vadd.f32 %v1094, %v1163
        %v1196 = vadd.f32 %v1095, %v1164
        %v1197 = vadd.f32 %v1096, %v1165
        %v1198 = vadd.f32 %v1097, %v1166
        %v1199 = vadd.f32 %v1098, %v1167
        %v1200 = vadd.f32 %v1099, %v1168
        %v1201 = vadd.f32 %v1100, %v1169
        %v1202 = vadd.f32 %v1101, %v1170
        %v1203 = vadd.f32 %v1102, %v1171
        %v1204 = vadd.f32 %v1103, %v1172
        %v1205 = vadd.f32 %v1104, %v1173
        %v1206 = vadd.f32 %v1105, %v1174
        %v1207 = vadd.f32 %v1106, %v1175
        %v1208 = vadd.f32 %v1107, %v1176
        %v1209 = vadd.f32 %v1108, %v1177
        %v1210 = vadd.f32 %v1109, %v1178
        %v1211 = vadd.f32 %v1110, %v1179
        %v1212 = vadd.f32 %v1111, %v1180
        %v1213 = vadd.f32 %v1112, %v1181
        %s1214 = scalar_lea.vmem [#allocation3], 32
        %v1215 = vld [vmem:[%s1214] sm:$0xff]
        %v1216 = vld [vmem:[%s1214 + $0x8] sm:$0xff]
        %v1217 = vld [vmem:[%s1214 + $0x10] sm:$0xff]
        %v1218 = vld [vmem:[%s1214 + $0x18] sm:$0xff]
        %v1219 = vld [vmem:[%s1214 + $0x20] sm:$0xff]
        %v1220 = vld [vmem:[%s1214 + $0x28] sm:$0xff]
        %v1221 = vld [vmem:[%s1214 + $0x30] sm:$0xff]
        %v1222 = vld [vmem:[%s1214 + $0x38] sm:$0xff]
        %v1223 = vld [vmem:[%s1214 + $0x40] sm:$0xff]
        %v1224 = vld [vmem:[%s1214 + $0x48] sm:$0xff]
        %v1225 = vld [vmem:[%s1214 + $0x50] sm:$0xff]
        %v1226 = vld [vmem:[%s1214 + $0x58] sm:$0xff]
        %v1227 = vld [vmem:[%s1214 + $0x60] sm:$0xff]
        %v1228 = vld [vmem:[%s1214 + $0x68] sm:$0xff]
        %v1229 = vld [vmem:[%s1214 + $0x70] sm:$0xff]
        %v1230 = vld [vmem:[%s1214 + $0x78] sm:$0xff]
        %v1231 = vld [vmem:[%s1214 + $0x80] sm:$0xff]
        %v1232 = vld [vmem:[%s1214 + $0x88] sm:$0xff]
        %v1233 = vld [vmem:[%s1214 + $0x90] sm:$0xff]
        %v1234 = vld [vmem:[%s1214 + $0x98] sm:$0xff]
        %v1235 = vld [vmem:[%s1214 + $0xa0] sm:$0xff]
        %v1236 = vld [vmem:[%s1214 + $0xa8] sm:$0xff]
        %v1237 = vld [vmem:[%s1214 + $0xb0] sm:$0xff]
        %v1238 = vld [vmem:[%s1214 + $0xb8] sm:$0xff]
        %v1239 = vld [vmem:[%s1214 + $0xc0] sm:$0xff]
        %v1240 = vld [vmem:[%s1214 + $0xc8] sm:$0xff]
        %v1241 = vld [vmem:[%s1214 + $0xd0] sm:$0xff]
        %v1242 = vld [vmem:[%s1214 + $0xd8] sm:$0xff]
        %v1243 = vld [vmem:[%s1214 + $0xe0] sm:$0xff]
        %v1244 = vld [vmem:[%s1214 + $0xe8] sm:$0xff]
        %v1245 = vld [vmem:[%s1214 + $0xf0] sm:$0xff]
        %v1246 = vld [vmem:[%s1214 + $0xf8] sm:$0xff]
        %v1247 = vlaneseq
        %v1248 = vshrl.u32 %v1247, 7
        %v1249 = vsub.s32 0, %v1248
        %v1250 = vrot.slane %v642, %v1249
        %v1251 = vmul.f32 %v1215, %v1250
        %v1252 = vmul.f32 %v1216, %v1250
        %v1253 = vmul.f32 %v1217, %v1250
        %v1254 = vmul.f32 %v1218, %v1250
        %v1255 = vmul.f32 %v1219, %v1250
        %v1256 = vmul.f32 %v1220, %v1250
        %v1257 = vmul.f32 %v1221, %v1250
        %v1258 = vmul.f32 %v1222, %v1250
        %v1259 = vmul.f32 %v1223, %v1250
        %v1260 = vmul.f32 %v1224, %v1250
        %v1261 = vmul.f32 %v1225, %v1250
        %v1262 = vmul.f32 %v1226, %v1250
        %v1263 = vmul.f32 %v1227, %v1250
        %v1264 = vmul.f32 %v1228, %v1250
        %v1265 = vmul.f32 %v1229, %v1250
        %v1266 = vmul.f32 %v1230, %v1250
        %v1267 = vmul.f32 %v1231, %v1250
        %v1268 = vmul.f32 %v1232, %v1250
        %v1269 = vmul.f32 %v1233, %v1250
        %v1270 = vmul.f32 %v1234, %v1250
        %v1271 = vmul.f32 %v1235, %v1250
        %v1272 = vmul.f32 %v1236, %v1250
        %v1273 = vmul.f32 %v1237, %v1250
        %v1274 = vmul.f32 %v1238, %v1250
        %v1275 = vmul.f32 %v1239, %v1250
        %v1276 = vmul.f32 %v1240, %v1250
        %v1277 = vmul.f32 %v1241, %v1250
        %v1278 = vmul.f32 %v1242, %v1250
        %v1279 = vmul.f32 %v1243, %v1250
        %v1280 = vmul.f32 %v1244, %v1250
        %v1281 = vmul.f32 %v1245, %v1250
        %v1282 = vmul.f32 %v1246, %v1250
        %v1283 = vadd.f32 %v1182, %v1251
        %v1284 = vadd.f32 %v1183, %v1252
        %v1285 = vadd.f32 %v1184, %v1253
        %v1286 = vadd.f32 %v1185, %v1254
        %v1287 = vadd.f32 %v1186, %v1255
        %v1288 = vadd.f32 %v1187, %v1256
        %v1289 = vadd.f32 %v1188, %v1257
        %v1290 = vadd.f32 %v1189, %v1258
        %v1291 = vadd.f32 %v1190, %v1259
        %v1292 = vadd.f32 %v1191, %v1260
        %v1293 = vadd.f32 %v1192, %v1261
        %v1294 = vadd.f32 %v1193, %v1262
        %v1295 = vadd.f32 %v1194, %v1263
        %v1296 = vadd.f32 %v1195, %v1264
        %v1297 = vadd.f32 %v1196, %v1265
        %v1298 = vadd.f32 %v1197, %v1266
        %v1299 = vadd.f32 %v1198, %v1267
        %v1300 = vadd.f32 %v1199, %v1268
        %v1301 = vadd.f32 %v1200, %v1269
        %v1302 = vadd.f32 %v1201, %v1270
        %v1303 = vadd.f32 %v1202, %v1271
        %v1304 = vadd.f32 %v1203, %v1272
        %v1305 = vadd.f32 %v1204, %v1273
        %v1306 = vadd.f32 %v1205, %v1274
        %v1307 = vadd.f32 %v1206, %v1275
        %v1308 = vadd.f32 %v1207, %v1276
        %v1309 = vadd.f32 %v1208, %v1277
        %v1310 = vadd.f32 %v1209, %v1278
        %v1311 = vadd.f32 %v1210, %v1279
        %v1312 = vadd.f32 %v1211, %v1280
        %v1313 = vadd.f32 %v1212, %v1281
        %v1314 = vadd.f32 %v1213, %v1282
        %s1315 = scalar_lea.vmem [#allocation4], 32
        %v1316 = vld [vmem:[%s1315] sm:$0xff]
        %v1317 = vld [vmem:[%s1315 + $0x8] sm:$0xff]
        %v1318 = vld [vmem:[%s1315 + $0x10] sm:$0xff]
        %v1319 = vld [vmem:[%s1315 + $0x18] sm:$0xff]
        %v1320 = vld [vmem:[%s1315 + $0x20] sm:$0xff]
        %v1321 = vld [vmem:[%s1315 + $0x28] sm:$0xff]
        %v1322 = vld [vmem:[%s1315 + $0x30] sm:$0xff]
        %v1323 = vld [vmem:[%s1315 + $0x38] sm:$0xff]
        %v1324 = vld [vmem:[%s1315 + $0x40] sm:$0xff]
        %v1325 = vld [vmem:[%s1315 + $0x48] sm:$0xff]
        %v1326 = vld [vmem:[%s1315 + $0x50] sm:$0xff]
        %v1327 = vld [vmem:[%s1315 + $0x58] sm:$0xff]
        %v1328 = vld [vmem:[%s1315 + $0x60] sm:$0xff]
        %v1329 = vld [vmem:[%s1315 + $0x68] sm:$0xff]
        %v1330 = vld [vmem:[%s1315 + $0x70] sm:$0xff]
        %v1331 = vld [vmem:[%s1315 + $0x78] sm:$0xff]
        %v1332 = vld [vmem:[%s1315 + $0x80] sm:$0xff]
        %v1333 = vld [vmem:[%s1315 + $0x88] sm:$0xff]
        %v1334 = vld [vmem:[%s1315 + $0x90] sm:$0xff]
        %v1335 = vld [vmem:[%s1315 + $0x98] sm:$0xff]
        %v1336 = vld [vmem:[%s1315 + $0xa0] sm:$0xff]
        %v1337 = vld [vmem:[%s1315 + $0xa8] sm:$0xff]
        %v1338 = vld [vmem:[%s1315 + $0xb0] sm:$0xff]
        %v1339 = vld [vmem:[%s1315 + $0xb8] sm:$0xff]
        %v1340 = vld [vmem:[%s1315 + $0xc0] sm:$0xff]
        %v1341 = vld [vmem:[%s1315 + $0xc8] sm:$0xff]
        %v1342 = vld [vmem:[%s1315 + $0xd0] sm:$0xff]
        %v1343 = vld [vmem:[%s1315 + $0xd8] sm:$0xff]
        %v1344 = vld [vmem:[%s1315 + $0xe0] sm:$0xff]
        %v1345 = vld [vmem:[%s1315 + $0xe8] sm:$0xff]
        %v1346 = vld [vmem:[%s1315 + $0xf0] sm:$0xff]
        %v1347 = vld [vmem:[%s1315 + $0xf8] sm:$0xff]
        %v1348 = vlaneseq
        %v1349 = vshrl.u32 %v1348, 7
        %v1350 = vsub.s32 1, %v1349
        %v1351 = vrot.slane %v642, %v1350
        %v1352 = vmul.f32 %v1316, %v1351
        %v1353 = vmul.f32 %v1317, %v1351
        %v1354 = vmul.f32 %v1318, %v1351
        %v1355 = vmul.f32 %v1319, %v1351
        %v1356 = vmul.f32 %v1320, %v1351
        %v1357 = vmul.f32 %v1321, %v1351
        %v1358 = vmul.f32 %v1322, %v1351
        %v1359 = vmul.f32 %v1323, %v1351
        %v1360 = vmul.f32 %v1324, %v1351
        %v1361 = vmul.f32 %v1325, %v1351
        %v1362 = vmul.f32 %v1326, %v1351
        %v1363 = vmul.f32 %v1327, %v1351
        %v1364 = vmul.f32 %v1328, %v1351
        %v1365 = vmul.f32 %v1329, %v1351
        %v1366 = vmul.f32 %v1330, %v1351
        %v1367 = vmul.f32 %v1331, %v1351
        %v1368 = vmul.f32 %v1332, %v1351
        %v1369 = vmul.f32 %v1333, %v1351
        %v1370 = vmul.f32 %v1334, %v1351
        %v1371 = vmul.f32 %v1335, %v1351
        %v1372 = vmul.f32 %v1336, %v1351
        %v1373 = vmul.f32 %v1337, %v1351
        %v1374 = vmul.f32 %v1338, %v1351
        %v1375 = vmul.f32 %v1339, %v1351
        %v1376 = vmul.f32 %v1340, %v1351
        %v1377 = vmul.f32 %v1341, %v1351
        %v1378 = vmul.f32 %v1342, %v1351
        %v1379 = vmul.f32 %v1343, %v1351
        %v1380 = vmul.f32 %v1344, %v1351
        %v1381 = vmul.f32 %v1345, %v1351
        %v1382 = vmul.f32 %v1346, %v1351
        %v1383 = vmul.f32 %v1347, %v1351
        %v1384 = vadd.f32 %v1283, %v1352
        %v1385 = vadd.f32 %v1284, %v1353
        %v1386 = vadd.f32 %v1285, %v1354
        %v1387 = vadd.f32 %v1286, %v1355
        %v1388 = vadd.f32 %v1287, %v1356
        %v1389 = vadd.f32 %v1288, %v1357
        %v1390 = vadd.f32 %v1289, %v1358
        %v1391 = vadd.f32 %v1290, %v1359
        %v1392 = vadd.f32 %v1291, %v1360
        %v1393 = vadd.f32 %v1292, %v1361
        %v1394 = vadd.f32 %v1293, %v1362
        %v1395 = vadd.f32 %v1294, %v1363
        %v1396 = vadd.f32 %v1295, %v1364
        %v1397 = vadd.f32 %v1296, %v1365
        %v1398 = vadd.f32 %v1297, %v1366
        %v1399 = vadd.f32 %v1298, %v1367
        %v1400 = vadd.f32 %v1299, %v1368
        %v1401 = vadd.f32 %v1300, %v1369
        %v1402 = vadd.f32 %v1301, %v1370
        %v1403 = vadd.f32 %v1302, %v1371
        %v1404 = vadd.f32 %v1303, %v1372
        %v1405 = vadd.f32 %v1304, %v1373
        %v1406 = vadd.f32 %v1305, %v1374
        %v1407 = vadd.f32 %v1306, %v1375
        %v1408 = vadd.f32 %v1307, %v1376
        %v1409 = vadd.f32 %v1308, %v1377
        %v1410 = vadd.f32 %v1309, %v1378
        %v1411 = vadd.f32 %v1310, %v1379
        %v1412 = vadd.f32 %v1311, %v1380
        %v1413 = vadd.f32 %v1312, %v1381
        %v1414 = vadd.f32 %v1313, %v1382
        %v1415 = vadd.f32 %v1314, %v1383
        %s1416 = scalar_lea.vmem [#allocation5], 32
        %v1417 = vld [vmem:[%s1416] sm:$0xff]
        %v1418 = vld [vmem:[%s1416 + $0x8] sm:$0xff]
        %v1419 = vld [vmem:[%s1416 + $0x10] sm:$0xff]
        %v1420 = vld [vmem:[%s1416 + $0x18] sm:$0xff]
        %v1421 = vld [vmem:[%s1416 + $0x20] sm:$0xff]
        %v1422 = vld [vmem:[%s1416 + $0x28] sm:$0xff]
        %v1423 = vld [vmem:[%s1416 + $0x30] sm:$0xff]
        %v1424 = vld [vmem:[%s1416 + $0x38] sm:$0xff]
        %v1425 = vld [vmem:[%s1416 + $0x40] sm:$0xff]
        %v1426 = vld [vmem:[%s1416 + $0x48] sm:$0xff]
        %v1427 = vld [vmem:[%s1416 + $0x50] sm:$0xff]
        %v1428 = vld [vmem:[%s1416 + $0x58] sm:$0xff]
        %v1429 = vld [vmem:[%s1416 + $0x60] sm:$0xff]
        %v1430 = vld [vmem:[%s1416 + $0x68] sm:$0xff]
        %v1431 = vld [vmem:[%s1416 + $0x70] sm:$0xff]
        %v1432 = vld [vmem:[%s1416 + $0x78] sm:$0xff]
        %v1433 = vld [vmem:[%s1416 + $0x80] sm:$0xff]
        %v1434 = vld [vmem:[%s1416 + $0x88] sm:$0xff]
        %v1435 = vld [vmem:[%s1416 + $0x90] sm:$0xff]
        %v1436 = vld [vmem:[%s1416 + $0x98] sm:$0xff]
        %v1437 = vld [vmem:[%s1416 + $0xa0] sm:$0xff]
        %v1438 = vld [vmem:[%s1416 + $0xa8] sm:$0xff]
        %v1439 = vld [vmem:[%s1416 + $0xb0] sm:$0xff]
        %v1440 = vld [vmem:[%s1416 + $0xb8] sm:$0xff]
        %v1441 = vld [vmem:[%s1416 + $0xc0] sm:$0xff]
        %v1442 = vld [vmem:[%s1416 + $0xc8] sm:$0xff]
        %v1443 = vld [vmem:[%s1416 + $0xd0] sm:$0xff]
        %v1444 = vld [vmem:[%s1416 + $0xd8] sm:$0xff]
        %v1445 = vld [vmem:[%s1416 + $0xe0] sm:$0xff]
        %v1446 = vld [vmem:[%s1416 + $0xe8] sm:$0xff]
        %v1447 = vld [vmem:[%s1416 + $0xf0] sm:$0xff]
        %v1448 = vld [vmem:[%s1416 + $0xf8] sm:$0xff]
        %v1449 = vlaneseq
        %v1450 = vshrl.u32 %v1449, 7
        %v1451 = vsub.s32 2, %v1450
        %v1452 = vrot.slane %v642, %v1451
        %v1453 = vmul.f32 %v1417, %v1452
        %v1454 = vmul.f32 %v1418, %v1452
        %v1455 = vmul.f32 %v1419, %v1452
        %v1456 = vmul.f32 %v1420, %v1452
        %v1457 = vmul.f32 %v1421, %v1452
        %v1458 = vmul.f32 %v1422, %v1452
        %v1459 = vmul.f32 %v1423, %v1452
        %v1460 = vmul.f32 %v1424, %v1452
        %v1461 = vmul.f32 %v1425, %v1452
        %v1462 = vmul.f32 %v1426, %v1452
        %v1463 = vmul.f32 %v1427, %v1452
        %v1464 = vmul.f32 %v1428, %v1452
        %v1465 = vmul.f32 %v1429, %v1452
        %v1466 = vmul.f32 %v1430, %v1452
        %v1467 = vmul.f32 %v1431, %v1452
        %v1468 = vmul.f32 %v1432, %v1452
        %v1469 = vmul.f32 %v1433, %v1452
        %v1470 = vmul.f32 %v1434, %v1452
        %v1471 = vmul.f32 %v1435, %v1452
        %v1472 = vmul.f32 %v1436, %v1452
        %v1473 = vmul.f32 %v1437, %v1452
        %v1474 = vmul.f32 %v1438, %v1452
        %v1475 = vmul.f32 %v1439, %v1452
        %v1476 = vmul.f32 %v1440, %v1452
        %v1477 = vmul.f32 %v1441, %v1452
        %v1478 = vmul.f32 %v1442, %v1452
        %v1479 = vmul.f32 %v1443, %v1452
        %v1480 = vmul.f32 %v1444, %v1452
        %v1481 = vmul.f32 %v1445, %v1452
        %v1482 = vmul.f32 %v1446, %v1452
        %v1483 = vmul.f32 %v1447, %v1452
        %v1484 = vmul.f32 %v1448, %v1452
        %v1485 = vadd.f32 %v1384, %v1453
        %v1486 = vadd.f32 %v1385, %v1454
        %v1487 = vadd.f32 %v1386, %v1455
        %v1488 = vadd.f32 %v1387, %v1456
        %v1489 = vadd.f32 %v1388, %v1457
        %v1490 = vadd.f32 %v1389, %v1458
        %v1491 = vadd.f32 %v1390, %v1459
        %v1492 = vadd.f32 %v1391, %v1460
        %v1493 = vadd.f32 %v1392, %v1461
        %v1494 = vadd.f32 %v1393, %v1462
        %v1495 = vadd.f32 %v1394, %v1463
        %v1496 = vadd.f32 %v1395, %v1464
        %v1497 = vadd.f32 %v1396, %v1465
        %v1498 = vadd.f32 %v1397, %v1466
        %v1499 = vadd.f32 %v1398, %v1467
        %v1500 = vadd.f32 %v1399, %v1468
        %v1501 = vadd.f32 %v1400, %v1469
        %v1502 = vadd.f32 %v1401, %v1470
        %v1503 = vadd.f32 %v1402, %v1471
        %v1504 = vadd.f32 %v1403, %v1472
        %v1505 = vadd.f32 %v1404, %v1473
        %v1506 = vadd.f32 %v1405, %v1474
        %v1507 = vadd.f32 %v1406, %v1475
        %v1508 = vadd.f32 %v1407, %v1476
        %v1509 = vadd.f32 %v1408, %v1477
        %v1510 = vadd.f32 %v1409, %v1478
        %v1511 = vadd.f32 %v1410, %v1479
        %v1512 = vadd.f32 %v1411, %v1480
        %v1513 = vadd.f32 %v1412, %v1481
        %v1514 = vadd.f32 %v1413, %v1482
        %v1515 = vadd.f32 %v1414, %v1483
        %v1516 = vadd.f32 %v1415, %v1484
        %v1517 = vld [vmem:[%s2] sm:$0x1]
        %v1519 = vlaneseq
        %v1520 = vshrl.u32 %v1519, 7
        %v1521 = vsub.s32 0, %v1520
        %v1522 = vrot.slane %v1517, %v1521
        %v1524 = vadd.f32 %v1485, %v1522
        %v1525 = vadd.f32 %v1486, %v1522
        %v1526 = vadd.f32 %v1487, %v1522
        %v1527 = vadd.f32 %v1488, %v1522
        %v1528 = vadd.f32 %v1489, %v1522
        %v1529 = vadd.f32 %v1490, %v1522
        %v1530 = vadd.f32 %v1491, %v1522
        %v1531 = vadd.f32 %v1492, %v1522
        %v1532 = vadd.f32 %v1493, %v1522
        %v1533 = vadd.f32 %v1494, %v1522
        %v1534 = vadd.f32 %v1495, %v1522
        %v1535 = vadd.f32 %v1496, %v1522
        %v1536 = vadd.f32 %v1497, %v1522
        %v1537 = vadd.f32 %v1498, %v1522
        %v1538 = vadd.f32 %v1499, %v1522
        %v1539 = vadd.f32 %v1500, %v1522
        %v1540 = vadd.f32 %v1501, %v1522
        %v1541 = vadd.f32 %v1502, %v1522
        %v1542 = vadd.f32 %v1503, %v1522
        %v1543 = vadd.f32 %v1504, %v1522
        %v1544 = vadd.f32 %v1505, %v1522
        %v1545 = vadd.f32 %v1506, %v1522
        %v1546 = vadd.f32 %v1507, %v1522
        %v1547 = vadd.f32 %v1508, %v1522
        %v1548 = vadd.f32 %v1509, %v1522
        %v1549 = vadd.f32 %v1510, %v1522
        %v1550 = vadd.f32 %v1511, %v1522
        %v1551 = vadd.f32 %v1512, %v1522
        %v1552 = vadd.f32 %v1513, %v1522
        %v1553 = vadd.f32 %v1514, %v1522
        %v1554 = vadd.f32 %v1515, %v1522
        %v1555 = vadd.f32 %v1516, %v1522
        %v1556 = vmax.f32 %v1524, 0.0
        %v1557 = vmax.f32 %v1525, 0.0
        %v1558 = vmax.f32 %v1526, 0.0
        %v1559 = vmax.f32 %v1527, 0.0
        %v1560 = vmax.f32 %v1528, 0.0
        %v1561 = vmax.f32 %v1529, 0.0
        %v1562 = vmax.f32 %v1530, 0.0
        %v1563 = vmax.f32 %v1531, 0.0
        %v1564 = vmax.f32 %v1532, 0.0
        %v1565 = vmax.f32 %v1533, 0.0
        %v1566 = vmax.f32 %v1534, 0.0
        %v1567 = vmax.f32 %v1535, 0.0
        %v1568 = vmax.f32 %v1536, 0.0
        %v1569 = vmax.f32 %v1537, 0.0
        %v1570 = vmax.f32 %v1538, 0.0
        %v1571 = vmax.f32 %v1539, 0.0
        %v1572 = vmax.f32 %v1540, 0.0
        %v1573 = vmax.f32 %v1541, 0.0
        %v1574 = vmax.f32 %v1542, 0.0
        %v1575 = vmax.f32 %v1543, 0.0
        %v1576 = vmax.f32 %v1544, 0.0
        %v1577 = vmax.f32 %v1545, 0.0
        %v1578 = vmax.f32 %v1546, 0.0
        %v1579 = vmax.f32 %v1547, 0.0
        %v1580 = vmax.f32 %v1548, 0.0
        %v1581 = vmax.f32 %v1549, 0.0
        %v1582 = vmax.f32 %v1550, 0.0
        %v1583 = vmax.f32 %v1551, 0.0
        %v1584 = vmax.f32 %v1552, 0.0
        %v1585 = vmax.f32 %v1553, 0.0
        %v1586 = vmax.f32 %v1554, 0.0
        %v1587 = vmax.f32 %v1555, 0.0
        %v1588 = vpack.c.bf16 %v1557, %v1556
        %v1589 = vpack.c.bf16 %v1559, %v1558
        %v1590 = vpack.c.bf16 %v1561, %v1560
        %v1591 = vpack.c.bf16 %v1563, %v1562
        %v1592 = vpack.c.bf16 %v1565, %v1564
        %v1593 = vpack.c.bf16 %v1567, %v1566
        %v1594 = vpack.c.bf16 %v1569, %v1568
        %v1595 = vpack.c.bf16 %v1571, %v1570
        %v1596 = vpack.c.bf16 %v1573, %v1572
        %v1597 = vpack.c.bf16 %v1575, %v1574
        %v1598 = vpack.c.bf16 %v1577, %v1576
        %v1599 = vpack.c.bf16 %v1579, %v1578
        %v1600 = vpack.c.bf16 %v1581, %v1580
        %v1601 = vpack.c.bf16 %v1583, %v1582
        %v1602 = vpack.c.bf16 %v1585, %v1584
        %v1603 = vpack.c.bf16 %v1587, %v1586
        %1604 = vst.msk [vmem:[#allocation6] sm:$0xff] %vm346, %v1588
        %1605 = vst.msk [vmem:[#allocation6 + $0x8] sm:$0xff] %vm346, %v1589
        %1606 = vst.msk [vmem:[#allocation6 + $0x10] sm:$0xff] %vm346, %v1590
        %1607 = vst.msk [vmem:[#allocation6 + $0x18] sm:$0xff] %vm346, %v1591
        %1608 = vst.msk [vmem:[#allocation6 + $0x20] sm:$0xff] %vm346, %v1592
        %1609 = vst.msk [vmem:[#allocation6 + $0x28] sm:$0xff] %vm346, %v1593
        %1610 = vst.msk [vmem:[#allocation6 + $0x30] sm:$0xff] %vm346, %v1594
        %1611 = vst.msk [vmem:[#allocation6 + $0x38] sm:$0xff] %vm346, %v1595
        %1612 = vst.msk [vmem:[#allocation6 + $0x40] sm:$0xff] %vm346, %v1596
        %1613 = vst.msk [vmem:[#allocation6 + $0x48] sm:$0xff] %vm346, %v1597
        %1614 = vst.msk [vmem:[#allocation6 + $0x50] sm:$0xff] %vm346, %v1598
        %1615 = vst.msk [vmem:[#allocation6 + $0x58] sm:$0xff] %vm346, %v1599
        %1616 = vst.msk [vmem:[#allocation6 + $0x60] sm:$0xff] %vm346, %v1600
        %1617 = vst.msk [vmem:[#allocation6 + $0x68] sm:$0xff] %vm346, %v1601
        %1618 = vst.msk [vmem:[#allocation6 + $0x70] sm:$0xff] %vm346, %v1602
        %1619 = vst.msk [vmem:[#allocation6 + $0x78] sm:$0xff] %vm346, %v1603
      $region44: #{tpu_custom_call.1} parent=39 // pred_fallthru
        _
      %v1620 = vld [vmem:[#allocation6] sm:$0xff]
      %v1621 = vld [vmem:[#allocation6 + $0x8] sm:$0xff]
      %v1622 = vld [vmem:[#allocation6 + $0x10] sm:$0xff]
      %v1623 = vld [vmem:[#allocation6 + $0x18] sm:$0xff]
      %v1624 = vld [vmem:[#allocation6 + $0x20] sm:$0xff]
      %v1625 = vld [vmem:[#allocation6 + $0x28] sm:$0xff]
      %v1626 = vld [vmem:[#allocation6 + $0x30] sm:$0xff]
      %v1627 = vld [vmem:[#allocation6 + $0x38] sm:$0xff]
      %v1628 = vld [vmem:[#allocation6 + $0x40] sm:$0xff]
      %v1629 = vld [vmem:[#allocation6 + $0x48] sm:$0xff]
      %v1630 = vld [vmem:[#allocation6 + $0x50] sm:$0xff]
      %v1631 = vld [vmem:[#allocation6 + $0x58] sm:$0xff]
      %v1632 = vld [vmem:[#allocation6 + $0x60] sm:$0xff]
      %v1633 = vld [vmem:[#allocation6 + $0x68] sm:$0xff]
      %v1634 = vld [vmem:[#allocation6 + $0x70] sm:$0xff]
      %v1635 = vld [vmem:[#allocation6 + $0x78] sm:$0xff]
      %v1636 = vld [vmem:[%s264] sm:$0x3]
      %v1637 = vld [vmem:[%s267] sm:$0x1]
      %v1639 = vlaneseq
      %v1640 = vshrl.u32 %v1639, 7
      %v1641 = vsub.s32 0, %v1640
      %v1642 = vrot.slane %v1637, %v1641
      %vm1644 = vcmask 31744
      %v1646 = vsel %vm1644, %v1620, 0
      %v1649 = vsel %vm1644, %v1621, 0
      %v1652 = vsel %vm1644, %v1622, 0
      %v1655 = vsel %vm1644, %v1623, 0
      %v1658 = vsel %vm1644, %v1624, 0
      %v1661 = vsel %vm1644, %v1625, 0
      %v1664 = vsel %vm1644, %v1626, 0
      %v1667 = vsel %vm1644, %v1627, 0
      %v1670 = vsel %vm1644, %v1628, 0
      %v1673 = vsel %vm1644, %v1629, 0
      %v1676 = vsel %vm1644, %v1630, 0
      %v1679 = vsel %vm1644, %v1631, 0
      %v1682 = vsel %vm1644, %v1632, 0
      %v1685 = vsel %vm1644, %v1633, 0
      %v1688 = vsel %vm1644, %v1634, 0
      %v1691 = vsel %vm1644, %v1635, 0
      %vm1693 = vcmask 1041408
      %v1695 = vsel %vm1693, %v1636, 0
      %1697 = vmatprep.subr.bf16.mxu0 0
      %1698 = vmatpush1.bf16.msra.mxu0 %v1695
      %1699 = vmatprep.subr.bf16.mxu0 0
      %1700 = vmatpush1.bf16.msra.mxu0 0
      %1701 = vmatprep.subr.bf16.mxu0 0
      %1702 = vmatpush1.bf16.msra.mxu0 0
      %1703 = vmatprep.subr.bf16.mxu0 0
      %1704 = vmatpush1.bf16.msra.mxu0 0
      %1705 = vmatprep.subr.bf16.mxu0 0
      %1706 = vmatpush1.bf16.msra.mxu0 0
      %1707 = vmatprep.subr.bf16.mxu0 0
      %1708 = vmatpush1.bf16.msra.mxu0 0
      %1709 = vmatprep.subr.bf16.mxu0 0
      %1710 = vmatpush1.bf16.msra.mxu0 0
      %1711 = vmatprep.subr.bf16.mxu0 0
      %1712 = vmatpush1.bf16.msra.mxu0 0
      %1713 = vmatprep.subr.bf16.mxu0 0
      %1714 = vmatpush1.bf16.msra.mxu0 0
      %1715 = vmatprep.subr.bf16.mxu0 0
      %1716 = vmatpush1.bf16.msra.mxu0 0
      %1717 = vmatprep.subr.bf16.mxu0 0
      %1718 = vmatpush1.bf16.msra.mxu0 0
      %1719 = vmatprep.subr.bf16.mxu0 0
      %1720 = vmatpush1.bf16.msra.mxu0 0
      %1721 = vmatprep.subr.bf16.mxu0 0
      %1722 = vmatpush1.bf16.msra.mxu0 0
      %1723 = vmatprep.subr.bf16.mxu0 0
      %1724 = vmatpush1.bf16.msra.mxu0 0
      %1725 = vmatprep.subr.bf16.mxu0 0
      %1726 = vmatpush1.bf16.msra.mxu0 0
      %1727 = vmatprep.subr.bf16.mxu0 0
      %1728 = vmatpush1.bf16.msra.mxu0 0
      %1729 = vmatprep.mubr.bf16.mxu0 0
      %1730 = vmatmul.mubr.bf16.gmra.mrb[0].mxu0 %v1646
      %v1731 = vpop.f32.mrb[0].mxu0
      %v1732 = vadd.f32 %v1642, %v1731
      %v1733 = vpop.f32.mrb[0].mxu0
      %v1734 = vpop.f32.mrb[0].mxu0
      %v1735 = vadd.f32 %v1642, %v1734
      %v1736 = vpop.f32.mrb[0].mxu0
      %1737 = vmatprep.mubr.bf16.mxu0 0
      %1738 = vmatmul.mubr.bf16.gmra.mrb[0].mxu0 %v1649
      %v1739 = vpop.f32.mrb[0].mxu0
      %v1740 = vadd.f32 %v1642, %v1739
      %v1741 = vpop.f32.mrb[0].mxu0
      %v1742 = vpop.f32.mrb[0].mxu0
      %v1743 = vadd.f32 %v1642, %v1742
      %v1744 = vpop.f32.mrb[0].mxu0
      %1745 = vmatprep.mubr.bf16.mxu0 0
      %1746 = vmatmul.mubr.bf16.gmra.mrb[0].mxu0 %v1652
      %v1747 = vpop.f32.mrb[0].mxu0
      %v1748 = vadd.f32 %v1642, %v1747
      %v1749 = vpop.f32.mrb[0].mxu0
      %v1750 = vpop.f32.mrb[0].mxu0
      %v1751 = vadd.f32 %v1642, %v1750
      %v1752 = vpop.f32.mrb[0].mxu0
      %1753 = vmatprep.mubr.bf16.mxu0 0
      %1754 = vmatmul.mubr.bf16.gmra.mrb[0].mxu0 %v1655
      %v1755 = vpop.f32.mrb[0].mxu0
      %v1756 = vadd.f32 %v1642, %v1755
      %v1757 = vpop.f32.mrb[0].mxu0
      %v1758 = vpop.f32.mrb[0].mxu0
      %v1759 = vadd.f32 %v1642, %v1758
      %v1760 = vpop.f32.mrb[0].mxu0
      %1761 = vmatprep.mubr.bf16.mxu0 0
      %1762 = vmatmul.mubr.bf16.gmra.mrb[0].mxu0 %v1658
      %v1763 = vpop.f32.mrb[0].mxu0
      %v1764 = vadd.f32 %v1642, %v1763
      %v1765 = vpop.f32.mrb[0].mxu0
      %v1766 = vpop.f32.mrb[0].mxu0
      %v1767 = vadd.f32 %v1642, %v1766
      %v1768 = vpop.f32.mrb[0].mxu0
      %1769 = vmatprep.mubr.bf16.mxu0 0
      %1770 = vmatmul.mubr.bf16.gmra.mrb[0].mxu0 %v1661
      %v1771 = vpop.f32.mrb[0].mxu0
      %v1772 = vadd.f32 %v1642, %v1771
      %v1773 = vpop.f32.mrb[0].mxu0
      %v1774 = vpop.f32.mrb[0].mxu0
      %v1775 = vadd.f32 %v1642, %v1774
      %v1776 = vpop.f32.mrb[0].mxu0
      %1777 = vmatprep.mubr.bf16.mxu0 0
      %1778 = vmatmul.mubr.bf16.gmra.mrb[0].mxu0 %v1664
      %v1779 = vpop.f32.mrb[0].mxu0
      %v1780 = vadd.f32 %v1642, %v1779
      %v1781 = vpop.f32.mrb[0].mxu0
      %v1782 = vpop.f32.mrb[0].mxu0
      %v1783 = vadd.f32 %v1642, %v1782
      %v1784 = vpop.f32.mrb[0].mxu0
      %1785 = vmatprep.mubr.bf16.mxu0 0
      %1786 = vmatmul.mubr.bf16.gmra.mrb[0].mxu0 %v1667
      %v1787 = vpop.f32.mrb[0].mxu0
      %v1788 = vadd.f32 %v1642, %v1787
      %v1789 = vpop.f32.mrb[0].mxu0
      %v1790 = vpop.f32.mrb[0].mxu0
      %v1791 = vadd.f32 %v1642, %v1790
      %v1792 = vpop.f32.mrb[0].mxu0
      %1793 = vmatprep.mubr.bf16.mxu0 0
      %1794 = vmatmul.mubr.bf16.gmra.mrb[0].mxu0 %v1670
      %v1795 = vpop.f32.mrb[0].mxu0
      %v1796 = vadd.f32 %v1642, %v1795
      %v1797 = vpop.f32.mrb[0].mxu0
      %v1798 = vpop.f32.mrb[0].mxu0
      %v1799 = vadd.f32 %v1642, %v1798
      %v1800 = vpop.f32.mrb[0].mxu0
      %1801 = vmatprep.mubr.bf16.mxu0 0
      %1802 = vmatmul.mubr.bf16.gmra.mrb[0].mxu0 %v1673
      %v1803 = vpop.f32.mrb[0].mxu0
      %v1804 = vadd.f32 %v1642, %v1803
      %v1805 = vpop.f32.mrb[0].mxu0
      %v1806 = vpop.f32.mrb[0].mxu0
      %v1807 = vadd.f32 %v1642, %v1806
      %v1808 = vpop.f32.mrb[0].mxu0
      %1809 = vmatprep.mubr.bf16.mxu0 0
      %1810 = vmatmul.mubr.bf16.gmra.mrb[0].mxu0 %v1676
      %v1811 = vpop.f32.mrb[0].mxu0
      %v1812 = vadd.f32 %v1642, %v1811
      %v1813 = vpop.f32.mrb[0].mxu0
      %v1814 = vpop.f32.mrb[0].mxu0
      %v1815 = vadd.f32 %v1642, %v1814
      %v1816 = vpop.f32.mrb[0].mxu0
      %1817 = vmatprep.mubr.bf16.mxu0 0
      %1818 = vmatmul.mubr.bf16.gmra.mrb[0].mxu0 %v1679
      %v1819 = vpop.f32.mrb[0].mxu0
      %v1820 = vadd.f32 %v1642, %v1819
      %v1821 = vpop.f32.mrb[0].mxu0
      %v1822 = vpop.f32.mrb[0].mxu0
      %v1823 = vadd.f32 %v1642, %v1822
      %v1824 = vpop.f32.mrb[0].mxu0
      %1825 = vmatprep.mubr.bf16.mxu0 0
      %1826 = vmatmul.mubr.bf16.gmra.mrb[0].mxu0 %v1682
      %v1827 = vpop.f32.mrb[0].mxu0
      %v1828 = vadd.f32 %v1642, %v1827
      %v1829 = vpop.f32.mrb[0].mxu0
      %v1830 = vpop.f32.mrb[0].mxu0
      %v1831 = vadd.f32 %v1642, %v1830
      %v1832 = vpop.f32.mrb[0].mxu0
      %1833 = vmatprep.mubr.bf16.mxu0 0
      %1834 = vmatmul.mubr.bf16.gmra.mrb[0].mxu0 %v1685
      %v1835 = vpop.f32.mrb[0].mxu0
      %v1836 = vadd.f32 %v1642, %v1835
      %v1837 = vpop.f32.mrb[0].mxu0
      %v1838 = vpop.f32.mrb[0].mxu0
      %v1839 = vadd.f32 %v1642, %v1838
      %v1840 = vpop.f32.mrb[0].mxu0
      %1841 = vmatprep.mubr.bf16.mxu0 0
      %1842 = vmatmul.mubr.bf16.gmra.mrb[0].mxu0 %v1688
      %v1843 = vpop.f32.mrb[0].mxu0
      %v1844 = vadd.f32 %v1642, %v1843
      %v1845 = vpop.f32.mrb[0].mxu0
      %v1846 = vpop.f32.mrb[0].mxu0
      %v1847 = vadd.f32 %v1642, %v1846
      %v1848 = vpop.f32.mrb[0].mxu0
      %1849 = vmatprep.mubr.bf16.mxu0 0
      %1850 = vmatmul.mubr.bf16.gmra.mrb[0].mxu0 %v1691
      %v1851 = vpop.f32.mrb[0].mxu0
      %v1852 = vadd.f32 %v1642, %v1851
      %v1853 = vpop.f32.mrb[0].mxu0
      %v1854 = vpop.f32.mrb[0].mxu0
      %v1855 = vadd.f32 %v1642, %v1854
      %v1856 = vpop.f32.mrb[0].mxu0
      %1857 = vdwg.mxu0
      %v1858 = vmax.f32 %v1732, 0.0
      %v1859 = vmax.f32 %v1735, 0.0
      %v1860 = vmax.f32 %v1740, 0.0
      %v1861 = vmax.f32 %v1743, 0.0
      %v1862 = vmax.f32 %v1748, 0.0
      %v1863 = vmax.f32 %v1751, 0.0
      %v1864 = vmax.f32 %v1756, 0.0
      %v1865 = vmax.f32 %v1759, 0.0
      %v1866 = vmax.f32 %v1764, 0.0
      %v1867 = vmax.f32 %v1767, 0.0
      %v1868 = vmax.f32 %v1772, 0.0
      %v1869 = vmax.f32 %v1775, 0.0
      %v1870 = vmax.f32 %v1780, 0.0
      %v1871 = vmax.f32 %v1783, 0.0
      %v1872 = vmax.f32 %v1788, 0.0
      %v1873 = vmax.f32 %v1791, 0.0
      %v1874 = vmax.f32 %v1796, 0.0
      %v1875 = vmax.f32 %v1799, 0.0
      %v1876 = vmax.f32 %v1804, 0.0
      %v1877 = vmax.f32 %v1807, 0.0
      %v1878 = vmax.f32 %v1812, 0.0
      %v1879 = vmax.f32 %v1815, 0.0
      %v1880 = vmax.f32 %v1820, 0.0
      %v1881 = vmax.f32 %v1823, 0.0
      %v1882 = vmax.f32 %v1828, 0.0
      %v1883 = vmax.f32 %v1831, 0.0
      %v1884 = vmax.f32 %v1836, 0.0
      %v1885 = vmax.f32 %v1839, 0.0
      %v1886 = vmax.f32 %v1844, 0.0
      %v1887 = vmax.f32 %v1847, 0.0
      %v1888 = vmax.f32 %v1852, 0.0
      %v1889 = vmax.f32 %v1855, 0.0
      %vm1890 = vcmask 64512
      %1891 = vst.msk [vmem:[%s275] sm:$0xff] %vm1890, %v1858
      %1892 = vst.msk [vmem:[%s275 + $0x8] sm:$0xff] %vm1890, %v1859
      %1893 = vst.msk [vmem:[%s275 + $0x10] sm:$0xff] %vm1890, %v1860
      %1894 = vst.msk [vmem:[%s275 + $0x18] sm:$0xff] %vm1890, %v1861
      %1895 = vst.msk [vmem:[%s275 + $0x20] sm:$0xff] %vm1890, %v1862
      %1896 = vst.msk [vmem:[%s275 + $0x28] sm:$0xff] %vm1890, %v1863
      %1897 = vst.msk [vmem:[%s275 + $0x30] sm:$0xff] %vm1890, %v1864
      %1898 = vst.msk [vmem:[%s275 + $0x38] sm:$0xff] %vm1890, %v1865
      %1899 = vst.msk [vmem:[%s275 + $0x40] sm:$0xff] %vm1890, %v1866
      %1900 = vst.msk [vmem:[%s275 + $0x48] sm:$0xff] %vm1890, %v1867
      %1901 = vst.msk [vmem:[%s275 + $0x50] sm:$0xff] %vm1890, %v1868
      %1902 = vst.msk [vmem:[%s275 + $0x58] sm:$0xff] %vm1890, %v1869
      %1903 = vst.msk [vmem:[%s275 + $0x60] sm:$0xff] %vm1890, %v1870
      %1904 = vst.msk [vmem:[%s275 + $0x68] sm:$0xff] %vm1890, %v1871
      %1905 = vst.msk [vmem:[%s275 + $0x70] sm:$0xff] %vm1890, %v1872
      %1906 = vst.msk [vmem:[%s275 + $0x78] sm:$0xff] %vm1890, %v1873
      %1907 = vst.msk [vmem:[%s275 + $0x80] sm:$0xff] %vm1890, %v1874
      %1908 = vst.msk [vmem:[%s275 + $0x88] sm:$0xff] %vm1890, %v1875
      %1909 = vst.msk [vmem:[%s275 + $0x90] sm:$0xff] %vm1890, %v1876
      %1910 = vst.msk [vmem:[%s275 + $0x98] sm:$0xff] %vm1890, %v1877
      %1911 = vst.msk [vmem:[%s275 + $0xa0] sm:$0xff] %vm1890, %v1878
      %1912 = vst.msk [vmem:[%s275 + $0xa8] sm:$0xff] %vm1890, %v1879
      %1913 = vst.msk [vmem:[%s275 + $0xb0] sm:$0xff] %vm1890, %v1880
      %1914 = vst.msk [vmem:[%s275 + $0xb8] sm:$0xff] %vm1890, %v1881
      %1915 = vst.msk [vmem:[%s275 + $0xc0] sm:$0xff] %vm1890, %v1882
      %1916 = vst.msk [vmem:[%s275 + $0xc8] sm:$0xff] %vm1890, %v1883
      %1917 = vst.msk [vmem:[%s275 + $0xd0] sm:$0xff] %vm1890, %v1884
      %1918 = vst.msk [vmem:[%s275 + $0xd8] sm:$0xff] %vm1890, %v1885
      %1919 = vst.msk [vmem:[%s275 + $0xe0] sm:$0xff] %vm1890, %v1886
      %1920 = vst.msk [vmem:[%s275 + $0xe8] sm:$0xff] %vm1890, %v1887
      %1921 = vst.msk [vmem:[%s275 + $0xf0] sm:$0xff] %vm1890, %v1888
      %1922 = vst.msk [vmem:[%s275 + $0xf8] sm:$0xff] %vm1890, %v1889
      %p1923 = scmp.lt.s32.totalorder %s20, 1
      %s1924 = scalar_select %p1923, %s20, 1
      %p1925 = scmp.lt.s32.totalorder %s21, 0
      %s1926 = scalar_select %p1925, %s21, 0
      %s1927 = smul.addr %s1924, 32
      %s1928 = sadd.s32 %s1926, %s1927
      %s1929 = smul.addr %s1928, 8
      %s1930 = scalar_lea.vmem %s5, %s1929
      // Predicated region
      $region45: #{tpu_custom_call.1} parent=39 // pred_check
        %p1931 = pneg %p168
      $region46: #{tpu_custom_call.1} parent=39 // pred_check_branch
        %1933 = sbr.rel (%p1931) target = $region48
      $region47: #{tpu_custom_call.1} parent=39 // pred_region
        _
      $region48: #{tpu_custom_call.1} parent=39 // pred_fallthru
        _
    $region40: #{tpu_custom_call.1} parent=5 // pred_fallthru
      _
    %p1934 = scmp.le.s32.totalorder 2, %s11
    // Predicated region
    $region49: #{tpu_custom_call.1} parent=5 // pred_check
      %p1935 = pneg %p1934
    $region50: #{tpu_custom_call.1} parent=5 // pred_check_branch
      %1937 = sbr.rel (%p1935) target = $region52
    $region51: #{tpu_custom_call.1} parent=5 // pred_region
      %s1938 = ssub.s32 %s11, 2
      // Predicated region
      $region53: #{tpu_custom_call.1} parent=51 // pred_check
        %p1939 = pneg %p174
      $region54: #{tpu_custom_call.1} parent=51 // pred_check_branch
        %1941 = sbr.rel (%p1939) target = $region56
      $region55: #{tpu_custom_call.1} parent=51 // pred_region
        %p1942 = scmp.lt.s32.totalorder %s22, 1
        %s1943 = scalar_select %p1942, %s22, 1
        %p1944 = scmp.lt.s32.totalorder %s23, 0
        %s1945 = scalar_select %p1944, %s23, 0
        %s1946 = smul.addr %s1943, 32
        %s1947 = sadd.s32 %s1945, %s1946
        %s1948 = smul.addr %s1947, 8
        %s1949 = scalar_lea.vmem %s5, %s1948
      $region56: #{tpu_custom_call.1} parent=51 // pred_fallthru
        _
    $region52: #{tpu_custom_call.1} parent=5 // pred_fallthru
      _
  $region6: #{tpu_custom_call.1} parent=0 // loop_footer
    %s15 = sadd.s32 1, %s11
  $region7: #{tpu_custom_call.1} parent=0 // loop_footer_branch
    %10 = sbr.rel target = $region3
  $region8: #{tpu_custom_call.1} parent=0 // loop_exit
    _

</llo_original>
